<compile_context>
chip_gen: v7x
topology: tpu7x:2x2x1
jax: 0.10.0
libtpu: 0.0.40
codegen_flags: <defaults>
</compile_context>

<pallas_src>
import jax
import jax.numpy as jnp
from jax.experimental import pallas as pl
from jax.experimental.pallas import tpu as pltpu


def _round_up(x, m):
    return ((x + m - 1) // m) * m


def siamese_kernel(
    x1_ref, x2_ref,            # bf16 activation slabs      (tb, tk)
    w1a_ref, b1a_ref,          # net1 first layer           (tk, hidden), (1, hidden)
    w2a_ref, b2a_ref,          # net2 first layer
    wb_ref, bb_ref,            # fused block-diag 2nd layer (2*hidden, 2*feat), (1, 2*feat)
    out_ref,                   # f32 output tile            (tb, 2*feat)
    acc1_ref, acc2_ref,        # f32 first-layer accumulators (tb, hidden)
):
    k = pl.program_id(1)

    @pl.when(k == 0)
    def _():
        acc1_ref[...] = jnp.zeros_like(acc1_ref)
        acc2_ref[...] = jnp.zeros_like(acc2_ref)

    # First layer: stream K slabs, bf16 MXU operands, f32 accumulation.
    acc1_ref[...] += jnp.dot(x1_ref[...], w1a_ref[...],
                             preferred_element_type=jnp.float32)
    acc2_ref[...] += jnp.dot(x2_ref[...], w2a_ref[...],
                             preferred_element_type=jnp.float32)

    @pl.when(k == pl.num_programs(1) - 1)
    def _():
        # bias + ReLU, then fused second layer + concat:
        #   [f1 | f2] = [h1 | h2] @ blockdiag(w1b, w2b) + [b1b | b2b]
        # One lane-dense 128-wide store; no separate concat of the outputs.
        h1 = jnp.maximum(acc1_ref[...] + b1a_ref[...], 0.0)
        h2 = jnp.maximum(acc2_ref[...] + b2a_ref[...], 0.0)
        h = jnp.concatenate([h1, h2], axis=1).astype(jnp.bfloat16)
        out_ref[...] = (
            jnp.dot(h, wb_ref[...], preferred_element_type=jnp.float32)
            + bb_ref[...]
        )


def _pick_batch_tile(batch):
    # Multiple of 8 sublanes; capped so the bf16 activation working set stays
    # a few MiB; prefer >= 2 grid steps so v7x's second TensorCore and the
    # DMA pipeline actually engage.
    tb = min(512, _round_up(batch, 8))
    if batch > 8:
        tb = min(tb, max(8, _round_up(pl.cdiv(batch, 2), 8)))
    return tb


def _pick_k_tile(in_dim):
    if in_dim <= 8192:
        return in_dim
    for tk in (2048, 1024, 512, 256, 128):
        if in_dim % tk == 0:
            return tk
    # TODO(synk): very large, non-lane-aligned in_dim falls back to one slab.
    return in_dim


def siamese_forward(img1, img2, params, *, batch_tile=None, k_tile=None):
    """img1, img2: [B, ...] (e.g. NCHW).  Returns [B, 2 * feat] float32."""
    (w1a, b1a, w1b, b1b, w2a, b2a, w2b, b2b) = params
    B = img1.shape[0]
    in_dim, hidden = w1a.shape
    feat = w1b.shape[1]

    # torch: img.float() then Flatten.  Cast once in HBM to bf16 so the
    # dominant activation DMA into the kernel is halved (MXU runs bf16 anyway).
    x1 = img1.reshape(B, -1).astype(jnp.bfloat16)
    x2 = img2.reshape(B, -1).astype(jnp.bfloat16)

    tb = batch_tile if batch_tile is not None else _pick_batch_tile(B)
    tk = k_tile if k_tile is not None else _pick_k_tile(in_dim)
    assert in_dim % tk == 0, "K slab must divide in_dim exactly"
    n_b = pl.cdiv(B, tb)
    n_k = in_dim // tk

    # Fuse the two second-layer weights into one block-diagonal matrix so both
    # branch outputs (and torch.cat along dim=1) come out of a single MXU op.
    wb = jnp.zeros((2 * hidden, 2 * feat), w1b.dtype)
    wb = wb.at[:hidden, :feat].set(w1b)
    wb = wb.at[hidden:, feat:].set(w2b)
    bb = jnp.concatenate([b1b, b2b], axis=1)

    # VMEM need: double-buffered activation + first-layer weight slabs, the
    # small resident tensors, output tiles and f32 accumulators.
    need = (
        2 * 2 * tb * tk * 2                      # x1, x2 slabs (bf16, 2 bufs)
        + 2 * 2 * tk * hidden * 2                # w1a, w2a slabs (bf16, 2 bufs)
        + 2 * (2 * hidden) * (2 * feat) * 2      # fused second-layer weights
        + 3 * 8 * 128 * 4                        # padded bias tiles
        + 2 * tb * (2 * feat) * 4                # output tiles
        + 2 * tb * hidden * 4                    # accumulators
    )
    vmem_limit = int(min(48 << 20, max(16 << 20, 2 * need)))

    out = pl.pallas_call(
        siamese_kernel,
        out_shape=jax.ShapeDtypeStruct((B, 2 * feat), jnp.float32),
        grid_spec=pltpu.PrefetchScalarGridSpec(
            num_scalar_prefetch=0,
            grid=(n_b, n_k),
            in_specs=[
                pl.BlockSpec((tb, tk), lambda i, k: (i, k)),                 # x1
                pl.BlockSpec((tb, tk), lambda i, k: (i, k)),                 # x2
                pl.BlockSpec((tk, hidden), lambda i, k: (k, 0)),             # w1a
                pl.BlockSpec((1, hidden), lambda i, k: (0, 0)),              # b1a
                pl.BlockSpec((tk, hidden), lambda i, k: (k, 0)),             # w2a
                pl.BlockSpec((1, hidden), lambda i, k: (0, 0)),              # b2a
                pl.BlockSpec((2 * hidden, 2 * feat), lambda i, k: (0, 0)),   # wb
                pl.BlockSpec((1, 2 * feat), lambda i, k: (0, 0)),            # bb
            ],
            out_specs=pl.BlockSpec((tb, 2 * feat), lambda i, k: (i, 0)),
            scratch_shapes=[
                pltpu.VMEM((tb, hidden), jnp.float32),
                pltpu.VMEM((tb, hidden), jnp.float32),
            ],
        ),
        compiler_params=pltpu.CompilerParams(
            dimension_semantics=("parallel", "arbitrary"),   # batch megacore, K reduction
            vmem_limit_bytes=vmem_limit,
        ),
    )(x1, x2, w1a, b1a, w2a, b2a, wb, bb)

    return out


def init_params(key, in_dim, hidden, feat):
    ks = jax.random.split(key, 8)
    sa = 1.0 / jnp.sqrt(in_dim)
    sb = 1.0 / jnp.sqrt(hidden)
    # Weights in bf16 (halves HBM->VMEM weight DMA); biases stay f32.
    w1a = (jax.random.normal(ks[0], (in_dim, hidden), jnp.float32) * sa).astype(jnp.bfloat16)
    b1a = jax.random.normal(ks[1], (1, hidden), jnp.float32) * 0.01
    w1b = (jax.random.normal(ks[2], (hidden, feat), jnp.float32) * sb).astype(jnp.bfloat16)
    b1b = jax.random.normal(ks[3], (1, feat), jnp.float32) * 0.01
    w2a = (jax.random.normal(ks[4], (in_dim, hidden), jnp.float32) * sa).astype(jnp.bfloat16)
    b2a = jax.random.normal(ks[5], (1, hidden), jnp.float32) * 0.01
    w2b = (jax.random.normal(ks[6], (hidden, feat), jnp.float32) * sb).astype(jnp.bfloat16)
    b2b = jax.random.normal(ks[7], (1, feat), jnp.float32) * 0.01
    return (w1a, b1a, w1b, b1b, w2a, b2a, w2b, b2b)


if __name__ == "__main__":
    key = jax.random.PRNGKey(0)
    k_img1, k_img2, k_params = jax.random.split(key, 3)

    B, C, H, W = 2, 4, 16, 16
    hidden, feat = 128, 64          # MXU/lane friendly: 2*feat == 128 lanes
    in_dim = C * H * W              # 1024

    img1 = jax.random.normal(k_img1, (B, C, H, W), jnp.float32)
    img2 = jax.random.normal(k_img2, (B, C, H, W), jnp.float32)
    params = init_params(k_params, in_dim, hidden, feat)

    out = siamese_forward(img1, img2, params)
    jax.block_until_ready(out)

    # Pure-JAX reference of the ORIGINAL formulation: two branches + concat,
    # with the same bf16-operand / f32-accumulate numerics the kernel uses.
    def ref(img1, img2, params):
        (w1a, b1a, w1b, b1b, w2a, b2a, w2b, b2b) = params
        x1 = img1.reshape(img1.shape[0], -1).astype(jnp.bfloat16)
        x2 = img2.reshape(img2.shape[0], -1).astype(jnp.bfloat16)
        h1 = jnp.maximum(jnp.dot(x1, w1a, preferred_element_type=jnp.float32) + b1a, 0.0)
        h2 = jnp.maximum(jnp.dot(x2, w2a, preferred_element_type=jnp.float32) + b2a, 0.0)
        f1 = jnp.dot(h1.astype(jnp.bfloat16), w1b, preferred_element_type=jnp.float32) + b1b
        f2 = jnp.dot(h2.astype(jnp.bfloat16), w2b, preferred_element_type=jnp.float32) + b2b
        return jnp.concatenate([f1, f2], axis=1)

    expected = ref(img1, img2, params)
    assert out.shape == (B, 2 * feat)
    assert jnp.allclose(out, expected, atol=5e-3, rtol=5e-3), \
        float(jnp.max(jnp.abs(out - expected)))

    # Also exercise the K-streaming (reduction grid axis) path at small shapes.
    out_ksplit = siamese_forward(img1, img2, params, batch_tile=8, k_tile=256)
    jax.block_until_ready(out_ksplit)
    assert jnp.allclose(out_ksplit, expected, atol=5e-3, rtol=5e-3), \
        float(jnp.max(jnp.abs(out_ksplit - expected)))

    print("KERNEL_OK")
</pallas_src>

<mosaic_0001>
module attributes {stable_mosaic.version = 11 : i64} {
  func.func @siamese_kernel(%arg0: i32, %arg1: i32, %arg2: memref<8x1024xbf16, #tpu.memory_space<vmem>>, %arg3: memref<8x1024xbf16, #tpu.memory_space<vmem>>, %arg4: memref<1024x128xbf16, #tpu.memory_space<vmem>>, %arg5: memref<1x128xf32, #tpu.memory_space<vmem>>, %arg6: memref<1024x128xbf16, #tpu.memory_space<vmem>>, %arg7: memref<1x128xf32, #tpu.memory_space<vmem>>, %arg8: memref<256x128xbf16, #tpu.memory_space<vmem>>, %arg9: memref<1x128xf32, #tpu.memory_space<vmem>>, %arg10: memref<8x128xf32, #tpu.memory_space<vmem>>, %arg11: memref<8x128xf32, #tpu.memory_space<vmem>>, %arg12: memref<8x128xf32, #tpu.memory_space<vmem>>) attributes {dimension_semantics = [#tpu.dimension_semantics<parallel>, #tpu.dimension_semantics<arbitrary>], iteration_bounds = array<i64: 1, 1>, scalar_prefetch = 0 : i64, scratch_operands = 2 : i64, tpu.core_type = #tpu.core_type<tc>, window_params = [{transform_indices = @transform_0, window_bounds = array<i64: 8, 1024>}, {transform_indices = @transform_1, window_bounds = array<i64: 8, 1024>}, {transform_indices = @transform_2, window_bounds = array<i64: 1024, 128>}, {pipeline_mode = #tpu.pipeline_mode<synchronous>, transform_indices = @transform_3, window_bounds = array<i64: 1, 128>}, {transform_indices = @transform_4, window_bounds = array<i64: 1024, 128>}, {pipeline_mode = #tpu.pipeline_mode<synchronous>, transform_indices = @transform_5, window_bounds = array<i64: 1, 128>}, {pipeline_mode = #tpu.pipeline_mode<synchronous>, transform_indices = @transform_6, window_bounds = array<i64: 256, 128>}, {pipeline_mode = #tpu.pipeline_mode<synchronous>, transform_indices = @transform_7, window_bounds = array<i64: 1, 128>}, {transform_indices = @transform_8, window_bounds = array<i64: 8, 128>}]} {
    %c0_i32 = arith.constant 0 : i32
    %0 = arith.cmpi eq, %arg1, %c0_i32 : i32
    %1 = arith.extui %0 : i1 to i32
    %c0_i32_0 = arith.constant 0 : i32
    %2 = arith.cmpi ne, %1, %c0_i32_0 : i32
    scf.if %2 {
      %cst_19 = arith.constant 0.000000e+00 : f32
      %18 = vector.broadcast %cst_19 : f32 to vector<8x128xf32>
      %c0_20 = arith.constant 0 : index
      %c0_21 = arith.constant 0 : index
      %19 = vector.load %arg11[%c0_20, %c0_21] : memref<8x128xf32, #tpu.memory_space<vmem>>, vector<8x128xf32>
      tpu.vector_store %arg11[%c0_20, %c0_21], %18 {strides = array<i32>} : memref<8x128xf32, #tpu.memory_space<vmem>>, vector<8x128xf32>,
      %cst_22 = arith.constant 0.000000e+00 : f32
      %20 = vector.broadcast %cst_22 : f32 to vector<8x128xf32>
      %c0_23 = arith.constant 0 : index
      %c0_24 = arith.constant 0 : index
      %21 = vector.load %arg12[%c0_23, %c0_24] : memref<8x128xf32, #tpu.memory_space<vmem>>, vector<8x128xf32>
      tpu.vector_store %arg12[%c0_23, %c0_24], %20 {strides = array<i32>} : memref<8x128xf32, #tpu.memory_space<vmem>>, vector<8x128xf32>,
    } else {
    }
    %c0 = arith.constant 0 : index
    %c0_1 = arith.constant 0 : index
    %3 = vector.load %arg11[%c0, %c0_1] : memref<8x128xf32, #tpu.memory_space<vmem>>, vector<8x128xf32>
    %c0_2 = arith.constant 0 : index
    %c0_3 = arith.constant 0 : index
    %4 = vector.load %arg2[%c0_2, %c0_3] : memref<8x1024xbf16, #tpu.memory_space<vmem>>, vector<8x1024xbf16>
    %c0_4 = arith.constant 0 : index
    %c0_5 = arith.constant 0 : index
    %5 = vector.load %arg4[%c0_4, %c0_5] : memref<1024x128xbf16, #tpu.memory_space<vmem>>, vector<1024x128xbf16>
    %cst = arith.constant dense<0.000000e+00> : vector<8x128xf32>
    %6 = tpu.matmul %4, %5, %cst {dimension_numbers = #tpu.dot_dimension_numbers<[1], [0], [0], [1], [0, 0, 1, 1], [], []>} : vector<8x1024xbf16>, vector<1024x128xbf16>, vector<8x128xf32> -> vector<8x128xf32>
    %7 = arith.addf %3, %6 : vector<8x128xf32>
    %c0_6 = arith.constant 0 : index
    %c0_7 = arith.constant 0 : index
    %8 = vector.load %arg11[%c0_6, %c0_7] : memref<8x128xf32, #tpu.memory_space<vmem>>, vector<8x128xf32>
    tpu.vector_store %arg11[%c0_6, %c0_7], %7 {strides = array<i32>} : memref<8x128xf32, #tpu.memory_space<vmem>>, vector<8x128xf32>,
    %c0_8 = arith.constant 0 : index
    %c0_9 = arith.constant 0 : index
    %9 = vector.load %arg12[%c0_8, %c0_9] : memref<8x128xf32, #tpu.memory_space<vmem>>, vector<8x128xf32>
    %c0_10 = arith.constant 0 : index
    %c0_11 = arith.constant 0 : index
    %10 = vector.load %arg3[%c0_10, %c0_11] : memref<8x1024xbf16, #tpu.memory_space<vmem>>, vector<8x1024xbf16>
    %c0_12 = arith.constant 0 : index
    %c0_13 = arith.constant 0 : index
    %11 = vector.load %arg6[%c0_12, %c0_13] : memref<1024x128xbf16, #tpu.memory_space<vmem>>, vector<1024x128xbf16>
    %cst_14 = arith.constant dense<0.000000e+00> : vector<8x128xf32>
    %12 = tpu.matmul %10, %11, %cst_14 {dimension_numbers = #tpu.dot_dimension_numbers<[1], [0], [0], [1], [0, 0, 1, 1], [], []>} : vector<8x1024xbf16>, vector<1024x128xbf16>, vector<8x128xf32> -> vector<8x128xf32>
    %13 = arith.addf %9, %12 : vector<8x128xf32>
    %c0_15 = arith.constant 0 : index
    %c0_16 = arith.constant 0 : index
    %14 = vector.load %arg12[%c0_15, %c0_16] : memref<8x128xf32, #tpu.memory_space<vmem>>, vector<8x128xf32>
    tpu.vector_store %arg12[%c0_15, %c0_16], %13 {strides = array<i32>} : memref<8x128xf32, #tpu.memory_space<vmem>>, vector<8x128xf32>,
    %c0_i32_17 = arith.constant 0 : i32
    %15 = arith.cmpi eq, %arg1, %c0_i32_17 : i32
    %16 = arith.extui %15 : i1 to i32
    %c0_i32_18 = arith.constant 0 : i32
    %17 = arith.cmpi ne, %16, %c0_i32_18 : i32
    scf.if %17 {
      %c0_19 = arith.constant 0 : index
      %c0_20 = arith.constant 0 : index
      %18 = vector.load %arg11[%c0_19, %c0_20] : memref<8x128xf32, #tpu.memory_space<vmem>>, vector<8x128xf32>
      %c0_21 = arith.constant 0 : index
      %c0_22 = arith.constant 0 : index
      %19 = vector.load %arg5[%c0_21, %c0_22] : memref<1x128xf32, #tpu.memory_space<vmem>>, vector<1x128xf32>
      %20 = vector.broadcast %19 : vector<1x128xf32> to vector<8x128xf32>
      %21 = arith.addf %18, %20 : vector<8x128xf32>
      %cst_23 = arith.constant 0.000000e+00 : f32
      %22 = vector.broadcast %cst_23 : f32 to vector<8x128xf32>
      %23 = arith.maximumf %21, %22 : vector<8x128xf32>
      %c0_24 = arith.constant 0 : index
      %c0_25 = arith.constant 0 : index
      %24 = vector.load %arg12[%c0_24, %c0_25] : memref<8x128xf32, #tpu.memory_space<vmem>>, vector<8x128xf32>
      %c0_26 = arith.constant 0 : index
      %c0_27 = arith.constant 0 : index
      %25 = vector.load %arg7[%c0_26, %c0_27] : memref<1x128xf32, #tpu.memory_space<vmem>>, vector<1x128xf32>
      %26 = vector.broadcast %25 : vector<1x128xf32> to vector<8x128xf32>
      %27 = arith.addf %24, %26 : vector<8x128xf32>
      %cst_28 = arith.constant 0.000000e+00 : f32
      %28 = vector.broadcast %cst_28 : f32 to vector<8x128xf32>
      %29 = arith.maximumf %27, %28 : vector<8x128xf32>
      %30 = tpu.concatenate %23, %29 in 1 : vector<8x128xf32>, vector<8x128xf32> -> vector<8x256xf32>
      %31 = arith.truncf %30 : vector<8x256xf32> to vector<8x256xbf16>
      %c0_29 = arith.constant 0 : index
      %c0_30 = arith.constant 0 : index
      %32 = vector.load %arg8[%c0_29, %c0_30] : memref<256x128xbf16, #tpu.memory_space<vmem>>, vector<256x128xbf16>
      %cst_31 = arith.constant dense<0.000000e+00> : vector<8x128xf32>
      %33 = tpu.matmul %31, %32, %cst_31 {dimension_numbers = #tpu.dot_dimension_numbers<[1], [0], [0], [1], [0, 0, 1, 1], [], []>} : vector<8x256xbf16>, vector<256x128xbf16>, vector<8x128xf32> -> vector<8x128xf32>
      %c0_32 = arith.constant 0 : index
      %c0_33 = arith.constant 0 : index
      %34 = vector.load %arg9[%c0_32, %c0_33] : memref<1x128xf32, #tpu.memory_space<vmem>>, vector<1x128xf32>
      %35 = vector.broadcast %34 : vector<1x128xf32> to vector<8x128xf32>
      %36 = arith.addf %33, %35 : vector<8x128xf32>
      %c0_34 = arith.constant 0 : index
      %c0_35 = arith.constant 0 : index
      %37 = vector.load %arg10[%c0_34, %c0_35] : memref<8x128xf32, #tpu.memory_space<vmem>>, vector<8x128xf32>
      tpu.vector_store %arg10[%c0_34, %c0_35], %36 {strides = array<i32>} : memref<8x128xf32, #tpu.memory_space<vmem>>, vector<8x128xf32>,
    } else {
    }
    return
  }
  func.func @transform_0(%arg0: i32, %arg1: i32) -> (i32, i32) {
    %c0_i32 = arith.constant 0 : i32
    return %arg0, %arg1 : i32, i32
  }
  func.func @transform_1(%arg0: i32, %arg1: i32) -> (i32, i32) {
    %c0_i32 = arith.constant 0 : i32
    return %arg0, %arg1 : i32, i32
  }
  func.func @transform_2(%arg0: i32, %arg1: i32) -> (i32, i32) {
    %c0_i32 = arith.constant 0 : i32
    %c0_i32_0 = arith.constant 0 : i32
    return %arg1, %c0_i32 : i32, i32
  }
  func.func @transform_3(%arg0: i32, %arg1: i32) -> (i32, i32) {
    %c0_i32 = arith.constant 0 : i32
    %c0_i32_0 = arith.constant 0 : i32
    %c0_i32_1 = arith.constant 0 : i32
    return %c0_i32, %c0_i32_0 : i32, i32
  }
  func.func @transform_4(%arg0: i32, %arg1: i32) -> (i32, i32) {
    %c0_i32 = arith.constant 0 : i32
    %c0_i32_0 = arith.constant 0 : i32
    return %arg1, %c0_i32 : i32, i32
  }
  func.func @transform_5(%arg0: i32, %arg1: i32) -> (i32, i32) {
    %c0_i32 = arith.constant 0 : i32
    %c0_i32_0 = arith.constant 0 : i32
    %c0_i32_1 = arith.constant 0 : i32
    return %c0_i32, %c0_i32_0 : i32, i32
  }
  func.func @transform_6(%arg0: i32, %arg1: i32) -> (i32, i32) {
    %c0_i32 = arith.constant 0 : i32
    %c0_i32_0 = arith.constant 0 : i32
    %c0_i32_1 = arith.constant 0 : i32
    return %c0_i32, %c0_i32_0 : i32, i32
  }
  func.func @transform_7(%arg0: i32, %arg1: i32) -> (i32, i32) {
    %c0_i32 = arith.constant 0 : i32
    %c0_i32_0 = arith.constant 0 : i32
    %c0_i32_1 = arith.constant 0 : i32
    return %c0_i32, %c0_i32_0 : i32, i32
  }
  func.func @transform_8(%arg0: i32, %arg1: i32) -> (i32, i32) {
    %c0_i32 = arith.constant 0 : i32
    %c0_i32_0 = arith.constant 0 : i32
    return %arg0, %c0_i32 : i32, i32
  }
}

</mosaic_0001>

<llo_original>
// kernel: tpu_custom_call.1
$region0: #{tpu_custom_call.1}
  #allocation0 [shape = 'u32[]', space=smem, size = 0x4, offset = 0x4, fixed_abs, tag = 'smem constant byte address 0x4 - core index']
  #allocation1 [shape = 'u32[144,128]{1,0:T(1,128)}', space=vmem, size = 0x12000, scoped, tag = 'internal scratch']
  #allocation2 [shape = 'f32[8,128]{1,0:T(8,128)}', space=vmem, size = 0x1000, scoped, tag = 'scratch operand']
  #allocation3 [shape = 'f32[8,128]{1,0:T(8,128)}', space=vmem, size = 0x1000, scoped, tag = 'scratch operand']
  %s0 = inlined_call_operand.hbm [shape: bf16[2,1024], index: 0, kind: input, shape index: {}]
  %s1 = inlined_call_operand.hbm [shape: bf16[2,1024], index: 1, kind: input, shape index: {}]
  %s2 = inlined_call_operand.hbm [shape: bf16[1024,128], index: 2, kind: input, shape index: {}]
  %s3 = inlined_call_operand.vmem [shape: f32[1,128], index: 3, kind: input, shape index: {}]
  %s4 = inlined_call_operand.hbm [shape: bf16[1024,128], index: 4, kind: input, shape index: {}]
  %s5 = inlined_call_operand.vmem [shape: f32[1,128], index: 5, kind: input, shape index: {}]
  %s6 = inlined_call_operand.hbm [shape: bf16[256,128], index: 6, kind: input, shape index: {}]
  %s7 = inlined_call_operand.vmem [shape: f32[1,128], index: 7, kind: input, shape index: {}]
  %s8 = inlined_call_operand.hbm [shape: f32[2,128], index: 8, kind: output, shape index: {}]
  %s9 = sld [smem:[#allocation0]]
  $region70: #{tpu_custom_call.1} parent=0
    _
  %s11 = ssub.s32 1, %s9
  %s12 = scalar_select 0, %s11, %s9
  $region1: #{tpu_custom_call.1} parent=0
    #allocation4 [shape = 'u8[16384]{0}', space=vmem, size = 0x4000, scoped, tag = 'input window, operand 0, single buffered']
    #allocation5 [shape = 's32[1]{0}', space=sflag, size = 0x4, scoped, tag = 'scoped memory for tpu_custom_call.1']
    #allocation6 [shape = 's32[1]{0}', space=sflag, size = 0x4, scoped, tag = 'scoped memory for tpu_custom_call.1']
    #allocation7 [shape = 'u8[16384]{0}', space=vmem, size = 0x4000, scoped, tag = 'input window, operand 1, single buffered']
    #allocation8 [shape = 's32[1]{0}', space=sflag, size = 0x4, scoped, tag = 'scoped memory for tpu_custom_call.1']
    #allocation9 [shape = 'u8[262144]{0}', space=vmem, size = 0x40000, scoped, tag = 'input window, operand 2, single buffered']
    #allocation10 [shape = 'u8[262144]{0}', space=vmem, size = 0x40000, scoped, tag = 'input window, operand 4, single buffered']
    #allocation11 [shape = 's32[1]{0}', space=sflag, size = 0x4, scoped, tag = 'scoped memory for tpu_custom_call.1']
    #allocation12 [shape = 'u8[65536]{0}', space=vmem, size = 0x10000, scoped, tag = 'input window, operand 6, single buffered']
    #allocation13 [shape = 'u8[4096]{0}', space=vmem, size = 0x1000, scoped, tag = 'output window, operand 0, single buffered']
    %13 = vsyncpa [#allocation5], 0
    %14 = vsyncpa [#allocation8], 0
    %15 = vsyncpa [#allocation11], 0
    %16 = vsyncpa [#allocation6], 0
    // Predicated region
    $region2: #{tpu_custom_call.1} parent=1 // pred_check
      _
    $region3: #{tpu_custom_call.1} parent=1 // pred_check_branch
      %18 = sbr.rel (0) target = $region5
    $region4: #{tpu_custom_call.1} parent=1 // pred_region
      %s20 = ssub.s32 512, 128
      %21 = vsyncadd [#allocation5], %s20
      %s22 = sshll.u32 [#allocation4], 4
      %s23 = int_to_ptr.vmem [resolvable:$true] %s22
      %28 = dma.hbm_to_vmem [thread:$0]  %s0, 128, %s23, [#allocation5], 128, 128, 8
    $region5: #{tpu_custom_call.1} parent=1 // pred_fallthru
      _
    // Predicated region
    $region6: #{tpu_custom_call.1} parent=1 // pred_check
      _
    $region7: #{tpu_custom_call.1} parent=1 // pred_check_branch
      %30 = sbr.rel (0) target = $region9
    $region8: #{tpu_custom_call.1} parent=1 // pred_region
      %s32 = ssub.s32 512, 128
      %33 = vsyncadd [#allocation8], %s32
      %s34 = sshll.u32 [#allocation7], 4
      %s35 = int_to_ptr.vmem [resolvable:$true] %s34
      %40 = dma.hbm_to_vmem [thread:$0]  %s1, 128, %s35, [#allocation8], 128, 128, 8
    $region9: #{tpu_custom_call.1} parent=1 // pred_fallthru
      _
    // Predicated region
    $region10: #{tpu_custom_call.1} parent=1 // pred_check
      _
    $region11: #{tpu_custom_call.1} parent=1 // pred_check_branch
      %42 = sbr.rel (0) target = $region13
    $region12: #{tpu_custom_call.1} parent=1 // pred_region
      %s44 = ssub.s32 8192, 8192
      %45 = vsyncadd [#allocation8], %s44
      %s46 = sshll.u32 [#allocation9], 4
      %s47 = int_to_ptr.vmem [resolvable:$true] %s46
      %52 = dma.hbm_to_vmem [thread:$0]  %s2, 8192, %s47, [#allocation8], 64, 64, 4
    $region13: #{tpu_custom_call.1} parent=1 // pred_fallthru
      _
    // Predicated region
    $region14: #{tpu_custom_call.1} parent=1 // pred_check
      _
    $region15: #{tpu_custom_call.1} parent=1 // pred_check_branch
      %54 = sbr.rel (0) target = $region17
    $region16: #{tpu_custom_call.1} parent=1 // pred_region
      _
    $region17: #{tpu_custom_call.1} parent=1 // pred_fallthru
      _
    // Predicated region
    $region18: #{tpu_custom_call.1} parent=1 // pred_check
      _
    $region19: #{tpu_custom_call.1} parent=1 // pred_check_branch
      %56 = sbr.rel (0) target = $region21
    $region20: #{tpu_custom_call.1} parent=1 // pred_region
      %s58 = ssub.s32 8192, 8192
      %59 = vsyncadd [#allocation11], %s58
      %s60 = sshll.u32 [#allocation10], 4
      %s61 = int_to_ptr.vmem [resolvable:$true] %s60
      %66 = dma.hbm_to_vmem [thread:$0]  %s4, 8192, %s61, [#allocation11], 64, 64, 4
    $region21: #{tpu_custom_call.1} parent=1 // pred_fallthru
      _
    // Predicated region
    $region22: #{tpu_custom_call.1} parent=1 // pred_check
      _
    $region23: #{tpu_custom_call.1} parent=1 // pred_check_branch
      %68 = sbr.rel (0) target = $region25
    $region24: #{tpu_custom_call.1} parent=1 // pred_region
      _
    $region25: #{tpu_custom_call.1} parent=1 // pred_fallthru
      _
    // Predicated region
    $region26: #{tpu_custom_call.1} parent=1 // pred_check
      _
    $region27: #{tpu_custom_call.1} parent=1 // pred_check_branch
      %70 = sbr.rel (0) target = $region29
    $region28: #{tpu_custom_call.1} parent=1 // pred_region
      %s72 = ssub.s32 2048, 2048
      %73 = vsyncadd [#allocation11], %s72
      %s74 = sshll.u32 [#allocation12], 4
      %s75 = int_to_ptr.vmem [resolvable:$true] %s74
      %80 = dma.hbm_to_vmem [thread:$0]  %s6, 2048, %s75, [#allocation11], 64, 64, 4
    $region29: #{tpu_custom_call.1} parent=1 // pred_fallthru
      _
    // Predicated region
    $region30: #{tpu_custom_call.1} parent=1 // pred_check
      _
    $region31: #{tpu_custom_call.1} parent=1 // pred_check_branch
      %82 = sbr.rel (0) target = $region33
    $region32: #{tpu_custom_call.1} parent=1 // pred_region
      _
    $region33: #{tpu_custom_call.1} parent=1 // pred_fallthru
      _
    // Predicated region
    $region34: #{tpu_custom_call.1} parent=1 // pred_check
      _
    $region35: #{tpu_custom_call.1} parent=1 // pred_check_branch
      %84 = sbr.rel (0) target = $region37
    $region36: #{tpu_custom_call.1} parent=1 // pred_region
      %85 = dma.done [#allocation5], 512
    $region37: #{tpu_custom_call.1} parent=1 // pred_fallthru
      _
    // Predicated region
    $region38: #{tpu_custom_call.1} parent=1 // pred_check
      _
    $region39: #{tpu_custom_call.1} parent=1 // pred_check_branch
      %87 = sbr.rel (0) target = $region41
    $region40: #{tpu_custom_call.1} parent=1 // pred_region
      %88 = dma.done [#allocation8], 512
    $region41: #{tpu_custom_call.1} parent=1 // pred_fallthru
      _
    // Predicated region
    $region42: #{tpu_custom_call.1} parent=1 // pred_check
      _
    $region43: #{tpu_custom_call.1} parent=1 // pred_check_branch
      %90 = sbr.rel (0) target = $region45
    $region44: #{tpu_custom_call.1} parent=1 // pred_region
      %91 = dma.done [#allocation8], 8192
    $region45: #{tpu_custom_call.1} parent=1 // pred_fallthru
      _
    // Predicated region
    $region46: #{tpu_custom_call.1} parent=1 // pred_check
      _
    $region47: #{tpu_custom_call.1} parent=1 // pred_check_branch
      %93 = sbr.rel (0) target = $region49
    $region48: #{tpu_custom_call.1} parent=1 // pred_region
      %94 = dma.done [#allocation11], 8192
    $region49: #{tpu_custom_call.1} parent=1 // pred_fallthru
      _
    // Predicated region
    $region50: #{tpu_custom_call.1} parent=1 // pred_check
      _
    $region51: #{tpu_custom_call.1} parent=1 // pred_check_branch
      %96 = sbr.rel (0) target = $region53
    $region52: #{tpu_custom_call.1} parent=1 // pred_region
      %97 = dma.done [#allocation11], 2048
    $region53: #{tpu_custom_call.1} parent=1 // pred_fallthru
      _
    %p99 = scmp.eq.s32.totalorder 0, 0
    // Predicated region
    $region54: #{tpu_custom_call.1} parent=1 // pred_check
      %p100 = pneg %p99
    $region55: #{tpu_custom_call.1} parent=1 // pred_check_branch
      %102 = sbr.rel (%p100) target = $region57
    $region56: #{tpu_custom_call.1} parent=1 // pred_region
      %103 = vst [vmem:[#allocation2] sm:$0xff] 0.0
      %104 = vst [vmem:[#allocation3] sm:$0xff] 0.0
    $region57: #{tpu_custom_call.1} parent=1 // pred_fallthru
      _
    %v105 = vld [vmem:[#allocation2] sm:$0xff]
    %v106 = vld [vmem:[#allocation4] sm:$0xff]
    %v107 = vld [vmem:[#allocation4 + $0x8] sm:$0xff]
    %v108 = vld [vmem:[#allocation4 + $0x10] sm:$0xff]
    %v109 = vld [vmem:[#allocation4 + $0x18] sm:$0xff]
    %v110 = vld [vmem:[#allocation9] sm:$0xf]
    %v111 = vld [vmem:[#allocation9 + $0x4] sm:$0xf]
    %v112 = vld [vmem:[#allocation9 + $0x8] sm:$0xf]
    %v113 = vld [vmem:[#allocation9 + $0xc] sm:$0xf]
    %v114 = vld [vmem:[#allocation9 + $0x10] sm:$0xf]
    %v115 = vld [vmem:[#allocation9 + $0x14] sm:$0xf]
    %v116 = vld [vmem:[#allocation9 + $0x18] sm:$0xf]
    %v117 = vld [vmem:[#allocation9 + $0x1c] sm:$0xf]
    %v118 = vld [vmem:[#allocation9 + $0x20] sm:$0xf]
    %v119 = vld [vmem:[#allocation9 + $0x24] sm:$0xf]
    %v120 = vld [vmem:[#allocation9 + $0x28] sm:$0xf]
    %v121 = vld [vmem:[#allocation9 + $0x2c] sm:$0xf]
    %v122 = vld [vmem:[#allocation9 + $0x30] sm:$0xf]
    %v123 = vld [vmem:[#allocation9 + $0x34] sm:$0xf]
    %v124 = vld [vmem:[#allocation9 + $0x38] sm:$0xf]
    %v125 = vld [vmem:[#allocation9 + $0x3c] sm:$0xf]
    %v126 = vld [vmem:[#allocation9 + $0x40] sm:$0xf]
    %v127 = vld [vmem:[#allocation9 + $0x44] sm:$0xf]
    %v128 = vld [vmem:[#allocation9 + $0x48] sm:$0xf]
    %v129 = vld [vmem:[#allocation9 + $0x4c] sm:$0xf]
    %v130 = vld [vmem:[#allocation9 + $0x50] sm:$0xf]
    %v131 = vld [vmem:[#allocation9 + $0x54] sm:$0xf]
    %v132 = vld [vmem:[#allocation9 + $0x58] sm:$0xf]
    %v133 = vld [vmem:[#allocation9 + $0x5c] sm:$0xf]
    %v134 = vld [vmem:[#allocation9 + $0x60] sm:$0xf]
    %v135 = vld [vmem:[#allocation9 + $0x64] sm:$0xf]
    %v136 = vld [vmem:[#allocation9 + $0x68] sm:$0xf]
    %v137 = vld [vmem:[#allocation9 + $0x6c] sm:$0xf]
    %v138 = vld [vmem:[#allocation9 + $0x70] sm:$0xf]
    %v139 = vld [vmem:[#allocation9 + $0x74] sm:$0xf]
    %v140 = vld [vmem:[#allocation9 + $0x78] sm:$0xf]
    %v141 = vld [vmem:[#allocation9 + $0x7c] sm:$0xf]
    %v142 = vld [vmem:[#allocation9 + $0x80] sm:$0xf]
    %v143 = vld [vmem:[#allocation9 + $0x84] sm:$0xf]
    %v144 = vld [vmem:[#allocation9 + $0x88] sm:$0xf]
    %v145 = vld [vmem:[#allocation9 + $0x8c] sm:$0xf]
    %v146 = vld [vmem:[#allocation9 + $0x90] sm:$0xf]
    %v147 = vld [vmem:[#allocation9 + $0x94] sm:$0xf]
    %v148 = vld [vmem:[#allocation9 + $0x98] sm:$0xf]
    %v149 = vld [vmem:[#allocation9 + $0x9c] sm:$0xf]
    %v150 = vld [vmem:[#allocation9 + $0xa0] sm:$0xf]
    %v151 = vld [vmem:[#allocation9 + $0xa4] sm:$0xf]
    %v152 = vld [vmem:[#allocation9 + $0xa8] sm:$0xf]
    %v153 = vld [vmem:[#allocation9 + $0xac] sm:$0xf]
    %v154 = vld [vmem:[#allocation9 + $0xb0] sm:$0xf]
    %v155 = vld [vmem:[#allocation9 + $0xb4] sm:$0xf]
    %v156 = vld [vmem:[#allocation9 + $0xb8] sm:$0xf]
    %v157 = vld [vmem:[#allocation9 + $0xbc] sm:$0xf]
    %v158 = vld [vmem:[#allocation9 + $0xc0] sm:$0xf]
    %v159 = vld [vmem:[#allocation9 + $0xc4] sm:$0xf]
    %v160 = vld [vmem:[#allocation9 + $0xc8] sm:$0xf]
    %v161 = vld [vmem:[#allocation9 + $0xcc] sm:$0xf]
    %v162 = vld [vmem:[#allocation9 + $0xd0] sm:$0xf]
    %v163 = vld [vmem:[#allocation9 + $0xd4] sm:$0xf]
    %v164 = vld [vmem:[#allocation9 + $0xd8] sm:$0xf]
    %v165 = vld [vmem:[#allocation9 + $0xdc] sm:$0xf]
    %v166 = vld [vmem:[#allocation9 + $0xe0] sm:$0xf]
    %v167 = vld [vmem:[#allocation9 + $0xe4] sm:$0xf]
    %v168 = vld [vmem:[#allocation9 + $0xe8] sm:$0xf]
    %v169 = vld [vmem:[#allocation9 + $0xec] sm:$0xf]
    %v170 = vld [vmem:[#allocation9 + $0xf0] sm:$0xf]
    %v171 = vld [vmem:[#allocation9 + $0xf4] sm:$0xf]
    %v172 = vld [vmem:[#allocation9 + $0xf8] sm:$0xf]
    %v173 = vld [vmem:[#allocation9 + $0xfc] sm:$0xf]
    %v174 = vld [vmem:[#allocation9 + $0x100] sm:$0xf]
    %v175 = vld [vmem:[#allocation9 + $0x104] sm:$0xf]
    %v176 = vld [vmem:[#allocation9 + $0x108] sm:$0xf]
    %v177 = vld [vmem:[#allocation9 + $0x10c] sm:$0xf]
    %v178 = vld [vmem:[#allocation9 + $0x110] sm:$0xf]
    %v179 = vld [vmem:[#allocation9 + $0x114] sm:$0xf]
    %v180 = vld [vmem:[#allocation9 + $0x118] sm:$0xf]
    %v181 = vld [vmem:[#allocation9 + $0x11c] sm:$0xf]
    %v182 = vld [vmem:[#allocation9 + $0x120] sm:$0xf]
    %v183 = vld [vmem:[#allocation9 + $0x124] sm:$0xf]
    %v184 = vld [vmem:[#allocation9 + $0x128] sm:$0xf]
    %v185 = vld [vmem:[#allocation9 + $0x12c] sm:$0xf]
    %v186 = vld [vmem:[#allocation9 + $0x130] sm:$0xf]
    %v187 = vld [vmem:[#allocation9 + $0x134] sm:$0xf]
    %v188 = vld [vmem:[#allocation9 + $0x138] sm:$0xf]
    %v189 = vld [vmem:[#allocation9 + $0x13c] sm:$0xf]
    %v190 = vld [vmem:[#allocation9 + $0x140] sm:$0xf]
    %v191 = vld [vmem:[#allocation9 + $0x144] sm:$0xf]
    %v192 = vld [vmem:[#allocation9 + $0x148] sm:$0xf]
    %v193 = vld [vmem:[#allocation9 + $0x14c] sm:$0xf]
    %v194 = vld [vmem:[#allocation9 + $0x150] sm:$0xf]
    %v195 = vld [vmem:[#allocation9 + $0x154] sm:$0xf]
    %v196 = vld [vmem:[#allocation9 + $0x158] sm:$0xf]
    %v197 = vld [vmem:[#allocation9 + $0x15c] sm:$0xf]
    %v198 = vld [vmem:[#allocation9 + $0x160] sm:$0xf]
    %v199 = vld [vmem:[#allocation9 + $0x164] sm:$0xf]
    %v200 = vld [vmem:[#allocation9 + $0x168] sm:$0xf]
    %v201 = vld [vmem:[#allocation9 + $0x16c] sm:$0xf]
    %v202 = vld [vmem:[#allocation9 + $0x170] sm:$0xf]
    %v203 = vld [vmem:[#allocation9 + $0x174] sm:$0xf]
    %v204 = vld [vmem:[#allocation9 + $0x178] sm:$0xf]
    %v205 = vld [vmem:[#allocation9 + $0x17c] sm:$0xf]
    %v206 = vld [vmem:[#allocation9 + $0x180] sm:$0xf]
    %v207 = vld [vmem:[#allocation9 + $0x184] sm:$0xf]
    %v208 = vld [vmem:[#allocation9 + $0x188] sm:$0xf]
    %v209 = vld [vmem:[#allocation9 + $0x18c] sm:$0xf]
    %v210 = vld [vmem:[#allocation9 + $0x190] sm:$0xf]
    %v211 = vld [vmem:[#allocation9 + $0x194] sm:$0xf]
    %v212 = vld [vmem:[#allocation9 + $0x198] sm:$0xf]
    %v213 = vld [vmem:[#allocation9 + $0x19c] sm:$0xf]
    %v214 = vld [vmem:[#allocation9 + $0x1a0] sm:$0xf]
    %v215 = vld [vmem:[#allocation9 + $0x1a4] sm:$0xf]
    %v216 = vld [vmem:[#allocation9 + $0x1a8] sm:$0xf]
    %v217 = vld [vmem:[#allocation9 + $0x1ac] sm:$0xf]
    %v218 = vld [vmem:[#allocation9 + $0x1b0] sm:$0xf]
    %v219 = vld [vmem:[#allocation9 + $0x1b4] sm:$0xf]
    %v220 = vld [vmem:[#allocation9 + $0x1b8] sm:$0xf]
    %v221 = vld [vmem:[#allocation9 + $0x1bc] sm:$0xf]
    %v222 = vld [vmem:[#allocation9 + $0x1c0] sm:$0xf]
    %v223 = vld [vmem:[#allocation9 + $0x1c4] sm:$0xf]
    %v224 = vld [vmem:[#allocation9 + $0x1c8] sm:$0xf]
    %v225 = vld [vmem:[#allocation9 + $0x1cc] sm:$0xf]
    %v226 = vld [vmem:[#allocation9 + $0x1d0] sm:$0xf]
    %v227 = vld [vmem:[#allocation9 + $0x1d4] sm:$0xf]
    %v228 = vld [vmem:[#allocation9 + $0x1d8] sm:$0xf]
    %v229 = vld [vmem:[#allocation9 + $0x1dc] sm:$0xf]
    %v230 = vld [vmem:[#allocation9 + $0x1e0] sm:$0xf]
    %v231 = vld [vmem:[#allocation9 + $0x1e4] sm:$0xf]
    %v232 = vld [vmem:[#allocation9 + $0x1e8] sm:$0xf]
    %v233 = vld [vmem:[#allocation9 + $0x1ec] sm:$0xf]
    %v234 = vld [vmem:[#allocation9 + $0x1f0] sm:$0xf]
    %v235 = vld [vmem:[#allocation9 + $0x1f4] sm:$0xf]
    %v236 = vld [vmem:[#allocation9 + $0x1f8] sm:$0xf]
    %v237 = vld [vmem:[#allocation9 + $0x1fc] sm:$0xf]
    %v242 = vcombine.low %v106, %v107
    %v243 = vcombine.high %v106, %v107
    %v244 = vcombine.low %v108, %v109
    %v245 = vcombine.high %v108, %v109
    %v247 = vunpack.c.l.s4 1966171168
    %v248 = vunpack.c.0.s8 %v247
    %v249 = vlaneseq
    %v250 = vshrl.u32 %v249, 7
    %v251 = vsub.s32 %v248, %v250
    %v252 = vrot.slane %v242, %v251
    %v254 = vunpack.c.l.s4 1966171168
    %v255 = vunpack.c.0.s8 %v254
    %v256 = vlaneseq
    %v257 = vshrl.u32 %v256, 7
    %v258 = vsub.s32 %v255, %v257
    %v259 = vrot.slane %v243, %v258
    %v261 = vunpack.c.l.s4 1966171168
    %v262 = vunpack.c.0.s8 %v261
    %v263 = vlaneseq
    %v264 = vshrl.u32 %v263, 7
    %v265 = vsub.s32 %v262, %v264
    %v266 = vrot.slane %v244, %v265
    %v268 = vunpack.c.l.s4 1966171168
    %v269 = vunpack.c.0.s8 %v268
    %v270 = vlaneseq
    %v271 = vshrl.u32 %v270, 7
    %v272 = vsub.s32 %v269, %v271
    %v273 = vrot.slane %v245, %v272
    %v274 = vcombine.low %v252, %v266
    %v275 = vcombine.high %v252, %v266
    %v276 = vcombine.low %v259, %v273
    %v277 = vcombine.high %v259, %v273
    %v279 = vunpack.c.l.s4 1966171168
    %v280 = vunpack.c.0.s8 %v279
    %v281 = vlaneseq
    %v282 = vshrl.u32 %v281, 7
    %v283 = vsub.s32 %v280, %v282
    %v284 = vrot.slane %v274, %v283
    %v286 = vunpack.c.l.s4 1966171168
    %v287 = vunpack.c.0.s8 %v286
    %v288 = vlaneseq
    %v289 = vshrl.u32 %v288, 7
    %v290 = vsub.s32 %v287, %v289
    %v291 = vrot.slane %v276, %v290
    %v293 = vunpack.c.l.s4 1966171168
    %v294 = vunpack.c.0.s8 %v293
    %v295 = vlaneseq
    %v296 = vshrl.u32 %v295, 7
    %v297 = vsub.s32 %v294, %v296
    %v298 = vrot.slane %v275, %v297
    %v300 = vunpack.c.l.s4 1966171168
    %v301 = vunpack.c.0.s8 %v300
    %v302 = vlaneseq
    %v303 = vshrl.u32 %v302, 7
    %v304 = vsub.s32 %v301, %v303
    %v305 = vrot.slane %v277, %v304
    %v306 = vcombine.high %v284, %v284
    %v307 = vcombine.high %v291, %v291
    %v308 = vcombine.high %v298, %v298
    %v309 = vcombine.high %v305, %v305
    %v446 = vunpack.c.l.b16 %v110
    %v447 = vunpack.c.l.b16 %v111
    %v448 = vunpack.c.l.b16 %v112
    %v449 = vunpack.c.l.b16 %v113
    %v450 = vunpack.c.l.b16 %v114
    %v451 = vunpack.c.l.b16 %v115
    %v452 = vunpack.c.l.b16 %v116
    %v453 = vunpack.c.l.b16 %v117
    %v454 = vunpack.c.l.b16 %v118
    %v455 = vunpack.c.l.b16 %v119
    %v456 = vunpack.c.l.b16 %v120
    %v457 = vunpack.c.l.b16 %v121
    %v458 = vunpack.c.l.b16 %v122
    %v459 = vunpack.c.l.b16 %v123
    %v460 = vunpack.c.l.b16 %v124
    %v461 = vunpack.c.l.b16 %v125
    %v462 = vunpack.c.l.b16 %v126
    %v463 = vunpack.c.l.b16 %v127
    %v464 = vunpack.c.l.b16 %v128
    %v465 = vunpack.c.l.b16 %v129
    %v466 = vunpack.c.l.b16 %v130
    %v467 = vunpack.c.l.b16 %v131
    %v468 = vunpack.c.l.b16 %v132
    %v469 = vunpack.c.l.b16 %v133
    %v470 = vunpack.c.l.b16 %v134
    %v471 = vunpack.c.l.b16 %v135
    %v472 = vunpack.c.l.b16 %v136
    %v473 = vunpack.c.l.b16 %v137
    %v474 = vunpack.c.l.b16 %v138
    %v475 = vunpack.c.l.b16 %v139
    %v476 = vunpack.c.l.b16 %v140
    %v477 = vunpack.c.l.b16 %v141
    %v478 = vunpack.c.l.b16 %v142
    %v479 = vunpack.c.l.b16 %v143
    %v480 = vunpack.c.l.b16 %v144
    %v481 = vunpack.c.l.b16 %v145
    %v482 = vunpack.c.l.b16 %v146
    %v483 = vunpack.c.l.b16 %v147
    %v484 = vunpack.c.l.b16 %v148
    %v485 = vunpack.c.l.b16 %v149
    %v486 = vunpack.c.l.b16 %v150
    %v487 = vunpack.c.l.b16 %v151
    %v488 = vunpack.c.l.b16 %v152
    %v489 = vunpack.c.l.b16 %v153
    %v490 = vunpack.c.l.b16 %v154
    %v491 = vunpack.c.l.b16 %v155
    %v492 = vunpack.c.l.b16 %v156
    %v493 = vunpack.c.l.b16 %v157
    %v494 = vunpack.c.l.b16 %v158
    %v495 = vunpack.c.l.b16 %v159
    %v496 = vunpack.c.l.b16 %v160
    %v497 = vunpack.c.l.b16 %v161
    %v498 = vunpack.c.l.b16 %v162
    %v499 = vunpack.c.l.b16 %v163
    %v500 = vunpack.c.l.b16 %v164
    %v501 = vunpack.c.l.b16 %v165
    %v502 = vunpack.c.l.b16 %v166
    %v503 = vunpack.c.l.b16 %v167
    %v504 = vunpack.c.l.b16 %v168
    %v505 = vunpack.c.l.b16 %v169
    %v506 = vunpack.c.l.b16 %v170
    %v507 = vunpack.c.l.b16 %v171
    %v508 = vunpack.c.l.b16 %v172
    %v509 = vunpack.c.l.b16 %v173
    %v510 = vunpack.c.l.b16 %v174
    %v511 = vunpack.c.l.b16 %v175
    %v512 = vunpack.c.l.b16 %v176
    %v513 = vunpack.c.l.b16 %v177
    %v514 = vunpack.c.l.b16 %v178
    %v515 = vunpack.c.l.b16 %v179
    %v516 = vunpack.c.l.b16 %v180
    %v517 = vunpack.c.l.b16 %v181
    %v518 = vunpack.c.l.b16 %v182
    %v519 = vunpack.c.l.b16 %v183
    %v520 = vunpack.c.l.b16 %v184
    %v521 = vunpack.c.l.b16 %v185
    %v522 = vunpack.c.l.b16 %v186
    %v523 = vunpack.c.l.b16 %v187
    %v524 = vunpack.c.l.b16 %v188
    %v525 = vunpack.c.l.b16 %v189
    %v526 = vunpack.c.l.b16 %v190
    %v527 = vunpack.c.l.b16 %v191
    %v528 = vunpack.c.l.b16 %v192
    %v529 = vunpack.c.l.b16 %v193
    %v530 = vunpack.c.l.b16 %v194
    %v531 = vunpack.c.l.b16 %v195
    %v532 = vunpack.c.l.b16 %v196
    %v533 = vunpack.c.l.b16 %v197
    %v534 = vunpack.c.l.b16 %v198
    %v535 = vunpack.c.l.b16 %v199
    %v536 = vunpack.c.l.b16 %v200
    %v537 = vunpack.c.l.b16 %v201
    %v538 = vunpack.c.l.b16 %v202
    %v539 = vunpack.c.l.b16 %v203
    %v540 = vunpack.c.l.b16 %v204
    %v541 = vunpack.c.l.b16 %v205
    %v542 = vunpack.c.l.b16 %v206
    %v543 = vunpack.c.l.b16 %v207
    %v544 = vunpack.c.l.b16 %v208
    %v545 = vunpack.c.l.b16 %v209
    %v546 = vunpack.c.l.b16 %v210
    %v547 = vunpack.c.l.b16 %v211
    %v548 = vunpack.c.l.b16 %v212
    %v549 = vunpack.c.l.b16 %v213
    %v550 = vunpack.c.l.b16 %v214
    %v551 = vunpack.c.l.b16 %v215
    %v552 = vunpack.c.l.b16 %v216
    %v553 = vunpack.c.l.b16 %v217
    %v554 = vunpack.c.l.b16 %v218
    %v555 = vunpack.c.l.b16 %v219
    %v556 = vunpack.c.l.b16 %v220
    %v557 = vunpack.c.l.b16 %v221
    %v558 = vunpack.c.l.b16 %v222
    %v559 = vunpack.c.l.b16 %v223
    %v560 = vunpack.c.l.b16 %v224
    %v561 = vunpack.c.l.b16 %v225
    %v562 = vunpack.c.l.b16 %v226
    %v563 = vunpack.c.l.b16 %v227
    %v564 = vunpack.c.l.b16 %v228
    %v565 = vunpack.c.l.b16 %v229
    %v566 = vunpack.c.l.b16 %v230
    %v567 = vunpack.c.l.b16 %v231
    %v568 = vunpack.c.l.b16 %v232
    %v569 = vunpack.c.l.b16 %v233
    %v570 = vunpack.c.l.b16 %v234
    %v571 = vunpack.c.l.b16 %v235
    %v572 = vunpack.c.l.b16 %v236
    %v573 = vunpack.c.l.b16 %v237
    %v574 = vpack.c.b16 %v447, %v446
    %v575 = vpack.c.b16 %v449, %v448
    %v576 = vpack.c.b16 %v451, %v450
    %v577 = vpack.c.b16 %v453, %v452
    %v578 = vpack.c.b16 %v455, %v454
    %v579 = vpack.c.b16 %v457, %v456
    %v580 = vpack.c.b16 %v459, %v458
    %v581 = vpack.c.b16 %v461, %v460
    %v582 = vpack.c.b16 %v463, %v462
    %v583 = vpack.c.b16 %v465, %v464
    %v584 = vpack.c.b16 %v467, %v466
    %v585 = vpack.c.b16 %v469, %v468
    %v586 = vpack.c.b16 %v471, %v470
    %v587 = vpack.c.b16 %v473, %v472
    %v588 = vpack.c.b16 %v475, %v474
    %v589 = vpack.c.b16 %v477, %v476
    %v590 = vpack.c.b16 %v479, %v478
    %v591 = vpack.c.b16 %v481, %v480
    %v592 = vpack.c.b16 %v483, %v482
    %v593 = vpack.c.b16 %v485, %v484
    %v594 = vpack.c.b16 %v487, %v486
    %v595 = vpack.c.b16 %v489, %v488
    %v596 = vpack.c.b16 %v491, %v490
    %v597 = vpack.c.b16 %v493, %v492
    %v598 = vpack.c.b16 %v495, %v494
    %v599 = vpack.c.b16 %v497, %v496
    %v600 = vpack.c.b16 %v499, %v498
    %v601 = vpack.c.b16 %v501, %v500
    %v602 = vpack.c.b16 %v503, %v502
    %v603 = vpack.c.b16 %v505, %v504
    %v604 = vpack.c.b16 %v507, %v506
    %v605 = vpack.c.b16 %v509, %v508
    %v606 = vpack.c.b16 %v511, %v510
    %v607 = vpack.c.b16 %v513, %v512
    %v608 = vpack.c.b16 %v515, %v514
    %v609 = vpack.c.b16 %v517, %v516
    %v610 = vpack.c.b16 %v519, %v518
    %v611 = vpack.c.b16 %v521, %v520
    %v612 = vpack.c.b16 %v523, %v522
    %v613 = vpack.c.b16 %v525, %v524
    %v614 = vpack.c.b16 %v527, %v526
    %v615 = vpack.c.b16 %v529, %v528
    %v616 = vpack.c.b16 %v531, %v530
    %v617 = vpack.c.b16 %v533, %v532
    %v618 = vpack.c.b16 %v535, %v534
    %v619 = vpack.c.b16 %v537, %v536
    %v620 = vpack.c.b16 %v539, %v538
    %v621 = vpack.c.b16 %v541, %v540
    %v622 = vpack.c.b16 %v543, %v542
    %v623 = vpack.c.b16 %v545, %v544
    %v624 = vpack.c.b16 %v547, %v546
    %v625 = vpack.c.b16 %v549, %v548
    %v626 = vpack.c.b16 %v551, %v550
    %v627 = vpack.c.b16 %v553, %v552
    %v628 = vpack.c.b16 %v555, %v554
    %v629 = vpack.c.b16 %v557, %v556
    %v630 = vpack.c.b16 %v559, %v558
    %v631 = vpack.c.b16 %v561, %v560
    %v632 = vpack.c.b16 %v563, %v562
    %v633 = vpack.c.b16 %v565, %v564
    %v634 = vpack.c.b16 %v567, %v566
    %v635 = vpack.c.b16 %v569, %v568
    %v636 = vpack.c.b16 %v571, %v570
    %v637 = vpack.c.b16 %v573, %v572
    %702 = vmatprep.subr.bf16.mxu0 0
    %703 = vmatpush1.bf16.msra.mxu0 %v574
    %704 = vmatprep.subr.bf16.mxu0 0
    %705 = vmatpush1.bf16.msra.mxu0 %v575
    %706 = vmatprep.subr.bf16.mxu0 0
    %707 = vmatpush1.bf16.msra.mxu0 %v576
    %708 = vmatprep.subr.bf16.mxu0 0
    %709 = vmatpush1.bf16.msra.mxu0 %v577
    %710 = vmatprep.subr.bf16.mxu0 0
    %711 = vmatpush1.bf16.msra.mxu0 %v578
    %712 = vmatprep.subr.bf16.mxu0 0
    %713 = vmatpush1.bf16.msra.mxu0 %v579
    %714 = vmatprep.subr.bf16.mxu0 0
    %715 = vmatpush1.bf16.msra.mxu0 %v580
    %716 = vmatprep.subr.bf16.mxu0 0
    %717 = vmatpush1.bf16.msra.mxu0 %v581
    %718 = vmatprep.subr.bf16.mxu0 0
    %719 = vmatpush1.bf16.msra.mxu0 %v582
    %720 = vmatprep.subr.bf16.mxu0 0
    %721 = vmatpush1.bf16.msra.mxu0 %v583
    %722 = vmatprep.subr.bf16.mxu0 0
    %723 = vmatpush1.bf16.msra.mxu0 %v584
    %724 = vmatprep.subr.bf16.mxu0 0
    %725 = vmatpush1.bf16.msra.mxu0 %v585
    %726 = vmatprep.subr.bf16.mxu0 0
    %727 = vmatpush1.bf16.msra.mxu0 %v586
    %728 = vmatprep.subr.bf16.mxu0 0
    %729 = vmatpush1.bf16.msra.mxu0 %v587
    %730 = vmatprep.subr.bf16.mxu0 0
    %731 = vmatpush1.bf16.msra.mxu0 %v588
    %732 = vmatprep.subr.bf16.mxu0 0
    %733 = vmatpush1.bf16.msra.mxu0 %v589
    %734 = vmatprep.mubr.bf16.mxu0 %v298
    %735 = vmatmul.mubr.bf16.gmra.mrb[0].mxu0 %v284
    %v736 = vpop.f32.mrb[0].mxu0
    %v737 = vadd.f32 0.0, %v736
    %v738 = vpop.f32.mrb[0].mxu0
    %v739 = vpop.f32.mrb[0].mxu0
    %v740 = vpop.f32.mrb[0].mxu0
    %741 = vdwg.mxu0
    %742 = vmatprep.subr.bf16.mxu0 0
    %743 = vmatpush1.bf16.msra.mxu0 %v590
    %744 = vmatprep.subr.bf16.mxu0 0
    %745 = vmatpush1.bf16.msra.mxu0 %v591
    %746 = vmatprep.subr.bf16.mxu0 0
    %747 = vmatpush1.bf16.msra.mxu0 %v592
    %748 = vmatprep.subr.bf16.mxu0 0
    %749 = vmatpush1.bf16.msra.mxu0 %v593
    %750 = vmatprep.subr.bf16.mxu0 0
    %751 = vmatpush1.bf16.msra.mxu0 %v594
    %752 = vmatprep.subr.bf16.mxu0 0
    %753 = vmatpush1.bf16.msra.mxu0 %v595
    %754 = vmatprep.subr.bf16.mxu0 0
    %755 = vmatpush1.bf16.msra.mxu0 %v596
    %756 = vmatprep.subr.bf16.mxu0 0
    %757 = vmatpush1.bf16.msra.mxu0 %v597
    %758 = vmatprep.subr.bf16.mxu0 0
    %759 = vmatpush1.bf16.msra.mxu0 %v598
    %760 = vmatprep.subr.bf16.mxu0 0
    %761 = vmatpush1.bf16.msra.mxu0 %v599
    %762 = vmatprep.subr.bf16.mxu0 0
    %763 = vmatpush1.bf16.msra.mxu0 %v600
    %764 = vmatprep.subr.bf16.mxu0 0
    %765 = vmatpush1.bf16.msra.mxu0 %v601
    %766 = vmatprep.subr.bf16.mxu0 0
    %767 = vmatpush1.bf16.msra.mxu0 %v602
    %768 = vmatprep.subr.bf16.mxu0 0
    %769 = vmatpush1.bf16.msra.mxu0 %v603
    %770 = vmatprep.subr.bf16.mxu0 0
    %771 = vmatpush1.bf16.msra.mxu0 %v604
    %772 = vmatprep.subr.bf16.mxu0 0
    %773 = vmatpush1.bf16.msra.mxu0 %v605
    %774 = vmatprep.mubr.bf16.mxu0 %v308
    %775 = vmatmul.mubr.bf16.gmra.mrb[0].mxu0 %v306
    %v776 = vpop.f32.mrb[0].mxu0
    %v777 = vadd.f32 %v737, %v776
    %v778 = vpop.f32.mrb[0].mxu0
    %v779 = vpop.f32.mrb[0].mxu0
    %v780 = vpop.f32.mrb[0].mxu0
    %781 = vdwg.mxu0
    %782 = vmatprep.subr.bf16.mxu0 0
    %783 = vmatpush1.bf16.msra.mxu0 %v606
    %784 = vmatprep.subr.bf16.mxu0 0
    %785 = vmatpush1.bf16.msra.mxu0 %v607
    %786 = vmatprep.subr.bf16.mxu0 0
    %787 = vmatpush1.bf16.msra.mxu0 %v608
    %788 = vmatprep.subr.bf16.mxu0 0
    %789 = vmatpush1.bf16.msra.mxu0 %v609
    %790 = vmatprep.subr.bf16.mxu0 0
    %791 = vmatpush1.bf16.msra.mxu0 %v610
    %792 = vmatprep.subr.bf16.mxu0 0
    %793 = vmatpush1.bf16.msra.mxu0 %v611
    %794 = vmatprep.subr.bf16.mxu0 0
    %795 = vmatpush1.bf16.msra.mxu0 %v612
    %796 = vmatprep.subr.bf16.mxu0 0
    %797 = vmatpush1.bf16.msra.mxu0 %v613
    %798 = vmatprep.subr.bf16.mxu0 0
    %799 = vmatpush1.bf16.msra.mxu0 %v614
    %800 = vmatprep.subr.bf16.mxu0 0
    %801 = vmatpush1.bf16.msra.mxu0 %v615
    %802 = vmatprep.subr.bf16.mxu0 0
    %803 = vmatpush1.bf16.msra.mxu0 %v616
    %804 = vmatprep.subr.bf16.mxu0 0
    %805 = vmatpush1.bf16.msra.mxu0 %v617
    %806 = vmatprep.subr.bf16.mxu0 0
    %807 = vmatpush1.bf16.msra.mxu0 %v618
    %808 = vmatprep.subr.bf16.mxu0 0
    %809 = vmatpush1.bf16.msra.mxu0 %v619
    %810 = vmatprep.subr.bf16.mxu0 0
    %811 = vmatpush1.bf16.msra.mxu0 %v620
    %812 = vmatprep.subr.bf16.mxu0 0
    %813 = vmatpush1.bf16.msra.mxu0 %v621
    %814 = vmatprep.mubr.bf16.mxu0 %v305
    %815 = vmatmul.mubr.bf16.gmra.mrb[0].mxu0 %v291
    %v816 = vpop.f32.mrb[0].mxu0
    %v817 = vadd.f32 %v777, %v816
    %v818 = vpop.f32.mrb[0].mxu0
    %v819 = vpop.f32.mrb[0].mxu0
    %v820 = vpop.f32.mrb[0].mxu0
    %821 = vdwg.mxu0
    %822 = vmatprep.subr.bf16.mxu0 0
    %823 = vmatpush1.bf16.msra.mxu0 %v622
    %824 = vmatprep.subr.bf16.mxu0 0
    %825 = vmatpush1.bf16.msra.mxu0 %v623
    %826 = vmatprep.subr.bf16.mxu0 0
    %827 = vmatpush1.bf16.msra.mxu0 %v624
    %828 = vmatprep.subr.bf16.mxu0 0
    %829 = vmatpush1.bf16.msra.mxu0 %v625
    %830 = vmatprep.subr.bf16.mxu0 0
    %831 = vmatpush1.bf16.msra.mxu0 %v626
    %832 = vmatprep.subr.bf16.mxu0 0
    %833 = vmatpush1.bf16.msra.mxu0 %v627
    %834 = vmatprep.subr.bf16.mxu0 0
    %835 = vmatpush1.bf16.msra.mxu0 %v628
    %836 = vmatprep.subr.bf16.mxu0 0
    %837 = vmatpush1.bf16.msra.mxu0 %v629
    %838 = vmatprep.subr.bf16.mxu0 0
    %839 = vmatpush1.bf16.msra.mxu0 %v630
    %840 = vmatprep.subr.bf16.mxu0 0
    %841 = vmatpush1.bf16.msra.mxu0 %v631
    %842 = vmatprep.subr.bf16.mxu0 0
    %843 = vmatpush1.bf16.msra.mxu0 %v632
    %844 = vmatprep.subr.bf16.mxu0 0
    %845 = vmatpush1.bf16.msra.mxu0 %v633
    %846 = vmatprep.subr.bf16.mxu0 0
    %847 = vmatpush1.bf16.msra.mxu0 %v634
    %848 = vmatprep.subr.bf16.mxu0 0
    %849 = vmatpush1.bf16.msra.mxu0 %v635
    %850 = vmatprep.subr.bf16.mxu0 0
    %851 = vmatpush1.bf16.msra.mxu0 %v636
    %852 = vmatprep.subr.bf16.mxu0 0
    %853 = vmatpush1.bf16.msra.mxu0 %v637
    %854 = vmatprep.mubr.bf16.mxu0 %v309
    %855 = vmatmul.mubr.bf16.gmra.mrb[0].mxu0 %v307
    %v856 = vpop.f32.mrb[0].mxu0
    %v857 = vadd.f32 %v817, %v856
    %v858 = vpop.f32.mrb[0].mxu0
    %v859 = vpop.f32.mrb[0].mxu0
    %v860 = vpop.f32.mrb[0].mxu0
    %861 = vdwg.mxu0
    %v862 = vadd.f32 %v105, %v857
    %863 = vst [vmem:[#allocation2] sm:$0xff] %v862
    %v864 = vld [vmem:[#allocation3] sm:$0xff]
    %v865 = vld [vmem:[#allocation7] sm:$0xff]
    %v866 = vld [vmem:[#allocation7 + $0x8] sm:$0xff]
    %v867 = vld [vmem:[#allocation7 + $0x10] sm:$0xff]
    %v868 = vld [vmem:[#allocation7 + $0x18] sm:$0xff]
    %v869 = vld [vmem:[#allocation10] sm:$0xf]
    %v870 = vld [vmem:[#allocation10 + $0x4] sm:$0xf]
    %v871 = vld [vmem:[#allocation10 + $0x8] sm:$0xf]
    %v872 = vld [vmem:[#allocation10 + $0xc] sm:$0xf]
    %v873 = vld [vmem:[#allocation10 + $0x10] sm:$0xf]
    %v874 = vld [vmem:[#allocation10 + $0x14] sm:$0xf]
    %v875 = vld [vmem:[#allocation10 + $0x18] sm:$0xf]
    %v876 = vld [vmem:[#allocation10 + $0x1c] sm:$0xf]
    %v877 = vld [vmem:[#allocation10 + $0x20] sm:$0xf]
    %v878 = vld [vmem:[#allocation10 + $0x24] sm:$0xf]
    %v879 = vld [vmem:[#allocation10 + $0x28] sm:$0xf]
    %v880 = vld [vmem:[#allocation10 + $0x2c] sm:$0xf]
    %v881 = vld [vmem:[#allocation10 + $0x30] sm:$0xf]
    %v882 = vld [vmem:[#allocation10 + $0x34] sm:$0xf]
    %v883 = vld [vmem:[#allocation10 + $0x38] sm:$0xf]
    %v884 = vld [vmem:[#allocation10 + $0x3c] sm:$0xf]
    %v885 = vld [vmem:[#allocation10 + $0x40] sm:$0xf]
    %v886 = vld [vmem:[#allocation10 + $0x44] sm:$0xf]
    %v887 = vld [vmem:[#allocation10 + $0x48] sm:$0xf]
    %v888 = vld [vmem:[#allocation10 + $0x4c] sm:$0xf]
    %v889 = vld [vmem:[#allocation10 + $0x50] sm:$0xf]
    %v890 = vld [vmem:[#allocation10 + $0x54] sm:$0xf]
    %v891 = vld [vmem:[#allocation10 + $0x58] sm:$0xf]
    %v892 = vld [vmem:[#allocation10 + $0x5c] sm:$0xf]
    %v893 = vld [vmem:[#allocation10 + $0x60] sm:$0xf]
    %v894 = vld [vmem:[#allocation10 + $0x64] sm:$0xf]
    %v895 = vld [vmem:[#allocation10 + $0x68] sm:$0xf]
    %v896 = vld [vmem:[#allocation10 + $0x6c] sm:$0xf]
    %v897 = vld [vmem:[#allocation10 + $0x70] sm:$0xf]
    %v898 = vld [vmem:[#allocation10 + $0x74] sm:$0xf]
    %v899 = vld [vmem:[#allocation10 + $0x78] sm:$0xf]
    %v900 = vld [vmem:[#allocation10 + $0x7c] sm:$0xf]
    %v901 = vld [vmem:[#allocation10 + $0x80] sm:$0xf]
    %v902 = vld [vmem:[#allocation10 + $0x84] sm:$0xf]
    %v903 = vld [vmem:[#allocation10 + $0x88] sm:$0xf]
    %v904 = vld [vmem:[#allocation10 + $0x8c] sm:$0xf]
    %v905 = vld [vmem:[#allocation10 + $0x90] sm:$0xf]
    %v906 = vld [vmem:[#allocation10 + $0x94] sm:$0xf]
    %v907 = vld [vmem:[#allocation10 + $0x98] sm:$0xf]
    %v908 = vld [vmem:[#allocation10 + $0x9c] sm:$0xf]
    %v909 = vld [vmem:[#allocation10 + $0xa0] sm:$0xf]
    %v910 = vld [vmem:[#allocation10 + $0xa4] sm:$0xf]
    %v911 = vld [vmem:[#allocation10 + $0xa8] sm:$0xf]
    %v912 = vld [vmem:[#allocation10 + $0xac] sm:$0xf]
    %v913 = vld [vmem:[#allocation10 + $0xb0] sm:$0xf]
    %v914 = vld [vmem:[#allocation10 + $0xb4] sm:$0xf]
    %v915 = vld [vmem:[#allocation10 + $0xb8] sm:$0xf]
    %v916 = vld [vmem:[#allocation10 + $0xbc] sm:$0xf]
    %v917 = vld [vmem:[#allocation10 + $0xc0] sm:$0xf]
    %v918 = vld [vmem:[#allocation10 + $0xc4] sm:$0xf]
    %v919 = vld [vmem:[#allocation10 + $0xc8] sm:$0xf]
    %v920 = vld [vmem:[#allocation10 + $0xcc] sm:$0xf]
    %v921 = vld [vmem:[#allocation10 + $0xd0] sm:$0xf]
    %v922 = vld [vmem:[#allocation10 + $0xd4] sm:$0xf]
    %v923 = vld [vmem:[#allocation10 + $0xd8] sm:$0xf]
    %v924 = vld [vmem:[#allocation10 + $0xdc] sm:$0xf]
    %v925 = vld [vmem:[#allocation10 + $0xe0] sm:$0xf]
    %v926 = vld [vmem:[#allocation10 + $0xe4] sm:$0xf]
    %v927 = vld [vmem:[#allocation10 + $0xe8] sm:$0xf]
    %v928 = vld [vmem:[#allocation10 + $0xec] sm:$0xf]
    %v929 = vld [vmem:[#allocation10 + $0xf0] sm:$0xf]
    %v930 = vld [vmem:[#allocation10 + $0xf4] sm:$0xf]
    %v931 = vld [vmem:[#allocation10 + $0xf8] sm:$0xf]
    %v932 = vld [vmem:[#allocation10 + $0xfc] sm:$0xf]
    %v933 = vld [vmem:[#allocation10 + $0x100] sm:$0xf]
    %v934 = vld [vmem:[#allocation10 + $0x104] sm:$0xf]
    %v935 = vld [vmem:[#allocation10 + $0x108] sm:$0xf]
    %v936 = vld [vmem:[#allocation10 + $0x10c] sm:$0xf]
    %v937 = vld [vmem:[#allocation10 + $0x110] sm:$0xf]
    %v938 = vld [vmem:[#allocation10 + $0x114] sm:$0xf]
    %v939 = vld [vmem:[#allocation10 + $0x118] sm:$0xf]
    %v940 = vld [vmem:[#allocation10 + $0x11c] sm:$0xf]
    %v941 = vld [vmem:[#allocation10 + $0x120] sm:$0xf]
    %v942 = vld [vmem:[#allocation10 + $0x124] sm:$0xf]
    %v943 = vld [vmem:[#allocation10 + $0x128] sm:$0xf]
    %v944 = vld [vmem:[#allocation10 + $0x12c] sm:$0xf]
    %v945 = vld [vmem:[#allocation10 + $0x130] sm:$0xf]
    %v946 = vld [vmem:[#allocation10 + $0x134] sm:$0xf]
    %v947 = vld [vmem:[#allocation10 + $0x138] sm:$0xf]
    %v948 = vld [vmem:[#allocation10 + $0x13c] sm:$0xf]
    %v949 = vld [vmem:[#allocation10 + $0x140] sm:$0xf]
    %v950 = vld [vmem:[#allocation10 + $0x144] sm:$0xf]
    %v951 = vld [vmem:[#allocation10 + $0x148] sm:$0xf]
    %v952 = vld [vmem:[#allocation10 + $0x14c] sm:$0xf]
    %v953 = vld [vmem:[#allocation10 + $0x150] sm:$0xf]
    %v954 = vld [vmem:[#allocation10 + $0x154] sm:$0xf]
    %v955 = vld [vmem:[#allocation10 + $0x158] sm:$0xf]
    %v956 = vld [vmem:[#allocation10 + $0x15c] sm:$0xf]
    %v957 = vld [vmem:[#allocation10 + $0x160] sm:$0xf]
    %v958 = vld [vmem:[#allocation10 + $0x164] sm:$0xf]
    %v959 = vld [vmem:[#allocation10 + $0x168] sm:$0xf]
    %v960 = vld [vmem:[#allocation10 + $0x16c] sm:$0xf]
    %v961 = vld [vmem:[#allocation10 + $0x170] sm:$0xf]
    %v962 = vld [vmem:[#allocation10 + $0x174] sm:$0xf]
    %v963 = vld [vmem:[#allocation10 + $0x178] sm:$0xf]
    %v964 = vld [vmem:[#allocation10 + $0x17c] sm:$0xf]
    %v965 = vld [vmem:[#allocation10 + $0x180] sm:$0xf]
    %v966 = vld [vmem:[#allocation10 + $0x184] sm:$0xf]
    %v967 = vld [vmem:[#allocation10 + $0x188] sm:$0xf]
    %v968 = vld [vmem:[#allocation10 + $0x18c] sm:$0xf]
    %v969 = vld [vmem:[#allocation10 + $0x190] sm:$0xf]
    %v970 = vld [vmem:[#allocation10 + $0x194] sm:$0xf]
    %v971 = vld [vmem:[#allocation10 + $0x198] sm:$0xf]
    %v972 = vld [vmem:[#allocation10 + $0x19c] sm:$0xf]
    %v973 = vld [vmem:[#allocation10 + $0x1a0] sm:$0xf]
    %v974 = vld [vmem:[#allocation10 + $0x1a4] sm:$0xf]
    %v975 = vld [vmem:[#allocation10 + $0x1a8] sm:$0xf]
    %v976 = vld [vmem:[#allocation10 + $0x1ac] sm:$0xf]
    %v977 = vld [vmem:[#allocation10 + $0x1b0] sm:$0xf]
    %v978 = vld [vmem:[#allocation10 + $0x1b4] sm:$0xf]
    %v979 = vld [vmem:[#allocation10 + $0x1b8] sm:$0xf]
    %v980 = vld [vmem:[#allocation10 + $0x1bc] sm:$0xf]
    %v981 = vld [vmem:[#allocation10 + $0x1c0] sm:$0xf]
    %v982 = vld [vmem:[#allocation10 + $0x1c4] sm:$0xf]
    %v983 = vld [vmem:[#allocation10 + $0x1c8] sm:$0xf]
    %v984 = vld [vmem:[#allocation10 + $0x1cc] sm:$0xf]
    %v985 = vld [vmem:[#allocation10 + $0x1d0] sm:$0xf]
    %v986 = vld [vmem:[#allocation10 + $0x1d4] sm:$0xf]
    %v987 = vld [vmem:[#allocation10 + $0x1d8] sm:$0xf]
    %v988 = vld [vmem:[#allocation10 + $0x1dc] sm:$0xf]
    %v989 = vld [vmem:[#allocation10 + $0x1e0] sm:$0xf]
    %v990 = vld [vmem:[#allocation10 + $0x1e4] sm:$0xf]
    %v991 = vld [vmem:[#allocation10 + $0x1e8] sm:$0xf]
    %v992 = vld [vmem:[#allocation10 + $0x1ec] sm:$0xf]
    %v993 = vld [vmem:[#allocation10 + $0x1f0] sm:$0xf]
    %v994 = vld [vmem:[#allocation10 + $0x1f4] sm:$0xf]
    %v995 = vld [vmem:[#allocation10 + $0x1f8] sm:$0xf]
    %v996 = vld [vmem:[#allocation10 + $0x1fc] sm:$0xf]
    %v1001 = vcombine.low %v865, %v866
    %v1002 = vcombine.high %v865, %v866
    %v1003 = vcombine.low %v867, %v868
    %v1004 = vcombine.high %v867, %v868
    %v1006 = vunpack.c.l.s4 1966171168
    %v1007 = vunpack.c.0.s8 %v1006
    %v1008 = vlaneseq
    %v1009 = vshrl.u32 %v1008, 7
    %v1010 = vsub.s32 %v1007, %v1009
    %v1011 = vrot.slane %v1001, %v1010
    %v1013 = vunpack.c.l.s4 1966171168
    %v1014 = vunpack.c.0.s8 %v1013
    %v1015 = vlaneseq
    %v1016 = vshrl.u32 %v1015, 7
    %v1017 = vsub.s32 %v1014, %v1016
    %v1018 = vrot.slane %v1002, %v1017
    %v1020 = vunpack.c.l.s4 1966171168
    %v1021 = vunpack.c.0.s8 %v1020
    %v1022 = vlaneseq
    %v1023 = vshrl.u32 %v1022, 7
    %v1024 = vsub.s32 %v1021, %v1023
    %v1025 = vrot.slane %v1003, %v1024
    %v1027 = vunpack.c.l.s4 1966171168
    %v1028 = vunpack.c.0.s8 %v1027
    %v1029 = vlaneseq
    %v1030 = vshrl.u32 %v1029, 7
    %v1031 = vsub.s32 %v1028, %v1030
    %v1032 = vrot.slane %v1004, %v1031
    %v1033 = vcombine.low %v1011, %v1025
    %v1034 = vcombine.high %v1011, %v1025
    %v1035 = vcombine.low %v1018, %v1032
    %v1036 = vcombine.high %v1018, %v1032
    %v1038 = vunpack.c.l.s4 1966171168
    %v1039 = vunpack.c.0.s8 %v1038
    %v1040 = vlaneseq
    %v1041 = vshrl.u32 %v1040, 7
    %v1042 = vsub.s32 %v1039, %v1041
    %v1043 = vrot.slane %v1033, %v1042
    %v1045 = vunpack.c.l.s4 1966171168
    %v1046 = vunpack.c.0.s8 %v1045
    %v1047 = vlaneseq
    %v1048 = vshrl.u32 %v1047, 7
    %v1049 = vsub.s32 %v1046, %v1048
    %v1050 = vrot.slane %v1035, %v1049
    %v1052 = vunpack.c.l.s4 1966171168
    %v1053 = vunpack.c.0.s8 %v1052
    %v1054 = vlaneseq
    %v1055 = vshrl.u32 %v1054, 7
    %v1056 = vsub.s32 %v1053, %v1055
    %v1057 = vrot.slane %v1034, %v1056
    %v1059 = vunpack.c.l.s4 1966171168
    %v1060 = vunpack.c.0.s8 %v1059
    %v1061 = vlaneseq
    %v1062 = vshrl.u32 %v1061, 7
    %v1063 = vsub.s32 %v1060, %v1062
    %v1064 = vrot.slane %v1036, %v1063
    %v1065 = vcombine.high %v1043, %v1043
    %v1066 = vcombine.high %v1050, %v1050
    %v1067 = vcombine.high %v1057, %v1057
    %v1068 = vcombine.high %v1064, %v1064
    %v1205 = vunpack.c.l.b16 %v869
    %v1206 = vunpack.c.l.b16 %v870
    %v1207 = vunpack.c.l.b16 %v871
    %v1208 = vunpack.c.l.b16 %v872
    %v1209 = vunpack.c.l.b16 %v873
    %v1210 = vunpack.c.l.b16 %v874
    %v1211 = vunpack.c.l.b16 %v875
    %v1212 = vunpack.c.l.b16 %v876
    %v1213 = vunpack.c.l.b16 %v877
    %v1214 = vunpack.c.l.b16 %v878
    %v1215 = vunpack.c.l.b16 %v879
    %v1216 = vunpack.c.l.b16 %v880
    %v1217 = vunpack.c.l.b16 %v881
    %v1218 = vunpack.c.l.b16 %v882
    %v1219 = vunpack.c.l.b16 %v883
    %v1220 = vunpack.c.l.b16 %v884
    %v1221 = vunpack.c.l.b16 %v885
    %v1222 = vunpack.c.l.b16 %v886
    %v1223 = vunpack.c.l.b16 %v887
    %v1224 = vunpack.c.l.b16 %v888
    %v1225 = vunpack.c.l.b16 %v889
    %v1226 = vunpack.c.l.b16 %v890
    %v1227 = vunpack.c.l.b16 %v891
    %v1228 = vunpack.c.l.b16 %v892
    %v1229 = vunpack.c.l.b16 %v893
    %v1230 = vunpack.c.l.b16 %v894
    %v1231 = vunpack.c.l.b16 %v895
    %v1232 = vunpack.c.l.b16 %v896
    %v1233 = vunpack.c.l.b16 %v897
    %v1234 = vunpack.c.l.b16 %v898
    %v1235 = vunpack.c.l.b16 %v899
    %v1236 = vunpack.c.l.b16 %v900
    %v1237 = vunpack.c.l.b16 %v901
    %v1238 = vunpack.c.l.b16 %v902
    %v1239 = vunpack.c.l.b16 %v903
    %v1240 = vunpack.c.l.b16 %v904
    %v1241 = vunpack.c.l.b16 %v905
    %v1242 = vunpack.c.l.b16 %v906
    %v1243 = vunpack.c.l.b16 %v907
    %v1244 = vunpack.c.l.b16 %v908
    %v1245 = vunpack.c.l.b16 %v909
    %v1246 = vunpack.c.l.b16 %v910
    %v1247 = vunpack.c.l.b16 %v911
    %v1248 = vunpack.c.l.b16 %v912
    %v1249 = vunpack.c.l.b16 %v913
    %v1250 = vunpack.c.l.b16 %v914
    %v1251 = vunpack.c.l.b16 %v915
    %v1252 = vunpack.c.l.b16 %v916
    %v1253 = vunpack.c.l.b16 %v917
    %v1254 = vunpack.c.l.b16 %v918
    %v1255 = vunpack.c.l.b16 %v919
    %v1256 = vunpack.c.l.b16 %v920
    %v1257 = vunpack.c.l.b16 %v921
    %v1258 = vunpack.c.l.b16 %v922
    %v1259 = vunpack.c.l.b16 %v923
    %v1260 = vunpack.c.l.b16 %v924
    %v1261 = vunpack.c.l.b16 %v925
    %v1262 = vunpack.c.l.b16 %v926
    %v1263 = vunpack.c.l.b16 %v927
    %v1264 = vunpack.c.l.b16 %v928
    %v1265 = vunpack.c.l.b16 %v929
    %v1266 = vunpack.c.l.b16 %v930
    %v1267 = vunpack.c.l.b16 %v931
    %v1268 = vunpack.c.l.b16 %v932
    %v1269 = vunpack.c.l.b16 %v933
    %v1270 = vunpack.c.l.b16 %v934
    %v1271 = vunpack.c.l.b16 %v935
    %v1272 = vunpack.c.l.b16 %v936
    %v1273 = vunpack.c.l.b16 %v937
    %v1274 = vunpack.c.l.b16 %v938
    %v1275 = vunpack.c.l.b16 %v939
    %v1276 = vunpack.c.l.b16 %v940
    %v1277 = vunpack.c.l.b16 %v941
    %v1278 = vunpack.c.l.b16 %v942
    %v1279 = vunpack.c.l.b16 %v943
    %v1280 = vunpack.c.l.b16 %v944
    %v1281 = vunpack.c.l.b16 %v945
    %v1282 = vunpack.c.l.b16 %v946
    %v1283 = vunpack.c.l.b16 %v947
    %v1284 = vunpack.c.l.b16 %v948
    %v1285 = vunpack.c.l.b16 %v949
    %v1286 = vunpack.c.l.b16 %v950
    %v1287 = vunpack.c.l.b16 %v951
    %v1288 = vunpack.c.l.b16 %v952
    %v1289 = vunpack.c.l.b16 %v953
    %v1290 = vunpack.c.l.b16 %v954
    %v1291 = vunpack.c.l.b16 %v955
    %v1292 = vunpack.c.l.b16 %v956
    %v1293 = vunpack.c.l.b16 %v957
    %v1294 = vunpack.c.l.b16 %v958
    %v1295 = vunpack.c.l.b16 %v959
    %v1296 = vunpack.c.l.b16 %v960
    %v1297 = vunpack.c.l.b16 %v961
    %v1298 = vunpack.c.l.b16 %v962
    %v1299 = vunpack.c.l.b16 %v963
    %v1300 = vunpack.c.l.b16 %v964
    %v1301 = vunpack.c.l.b16 %v965
    %v1302 = vunpack.c.l.b16 %v966
    %v1303 = vunpack.c.l.b16 %v967
    %v1304 = vunpack.c.l.b16 %v968
    %v1305 = vunpack.c.l.b16 %v969
    %v1306 = vunpack.c.l.b16 %v970
    %v1307 = vunpack.c.l.b16 %v971
    %v1308 = vunpack.c.l.b16 %v972
    %v1309 = vunpack.c.l.b16 %v973
    %v1310 = vunpack.c.l.b16 %v974
    %v1311 = vunpack.c.l.b16 %v975
    %v1312 = vunpack.c.l.b16 %v976
    %v1313 = vunpack.c.l.b16 %v977
    %v1314 = vunpack.c.l.b16 %v978
    %v1315 = vunpack.c.l.b16 %v979
    %v1316 = vunpack.c.l.b16 %v980
    %v1317 = vunpack.c.l.b16 %v981
    %v1318 = vunpack.c.l.b16 %v982
    %v1319 = vunpack.c.l.b16 %v983
    %v1320 = vunpack.c.l.b16 %v984
    %v1321 = vunpack.c.l.b16 %v985
    %v1322 = vunpack.c.l.b16 %v986
    %v1323 = vunpack.c.l.b16 %v987
    %v1324 = vunpack.c.l.b16 %v988
    %v1325 = vunpack.c.l.b16 %v989
    %v1326 = vunpack.c.l.b16 %v990
    %v1327 = vunpack.c.l.b16 %v991
    %v1328 = vunpack.c.l.b16 %v992
    %v1329 = vunpack.c.l.b16 %v993
    %v1330 = vunpack.c.l.b16 %v994
    %v1331 = vunpack.c.l.b16 %v995
    %v1332 = vunpack.c.l.b16 %v996
    %v1333 = vpack.c.b16 %v1206, %v1205
    %v1334 = vpack.c.b16 %v1208, %v1207
    %v1335 = vpack.c.b16 %v1210, %v1209
    %v1336 = vpack.c.b16 %v1212, %v1211
    %v1337 = vpack.c.b16 %v1214, %v1213
    %v1338 = vpack.c.b16 %v1216, %v1215
    %v1339 = vpack.c.b16 %v1218, %v1217
    %v1340 = vpack.c.b16 %v1220, %v1219
    %v1341 = vpack.c.b16 %v1222, %v1221
    %v1342 = vpack.c.b16 %v1224, %v1223
    %v1343 = vpack.c.b16 %v1226, %v1225
    %v1344 = vpack.c.b16 %v1228, %v1227
    %v1345 = vpack.c.b16 %v1230, %v1229
    %v1346 = vpack.c.b16 %v1232, %v1231
    %v1347 = vpack.c.b16 %v1234, %v1233
    %v1348 = vpack.c.b16 %v1236, %v1235
    %v1349 = vpack.c.b16 %v1238, %v1237
    %v1350 = vpack.c.b16 %v1240, %v1239
    %v1351 = vpack.c.b16 %v1242, %v1241
    %v1352 = vpack.c.b16 %v1244, %v1243
    %v1353 = vpack.c.b16 %v1246, %v1245
    %v1354 = vpack.c.b16 %v1248, %v1247
    %v1355 = vpack.c.b16 %v1250, %v1249
    %v1356 = vpack.c.b16 %v1252, %v1251
    %v1357 = vpack.c.b16 %v1254, %v1253
    %v1358 = vpack.c.b16 %v1256, %v1255
    %v1359 = vpack.c.b16 %v1258, %v1257
    %v1360 = vpack.c.b16 %v1260, %v1259
    %v1361 = vpack.c.b16 %v1262, %v1261
    %v1362 = vpack.c.b16 %v1264, %v1263
    %v1363 = vpack.c.b16 %v1266, %v1265
    %v1364 = vpack.c.b16 %v1268, %v1267
    %v1365 = vpack.c.b16 %v1270, %v1269
    %v1366 = vpack.c.b16 %v1272, %v1271
    %v1367 = vpack.c.b16 %v1274, %v1273
    %v1368 = vpack.c.b16 %v1276, %v1275
    %v1369 = vpack.c.b16 %v1278, %v1277
    %v1370 = vpack.c.b16 %v1280, %v1279
    %v1371 = vpack.c.b16 %v1282, %v1281
    %v1372 = vpack.c.b16 %v1284, %v1283
    %v1373 = vpack.c.b16 %v1286, %v1285
    %v1374 = vpack.c.b16 %v1288, %v1287
    %v1375 = vpack.c.b16 %v1290, %v1289
    %v1376 = vpack.c.b16 %v1292, %v1291
    %v1377 = vpack.c.b16 %v1294, %v1293
    %v1378 = vpack.c.b16 %v1296, %v1295
    %v1379 = vpack.c.b16 %v1298, %v1297
    %v1380 = vpack.c.b16 %v1300, %v1299
    %v1381 = vpack.c.b16 %v1302, %v1301
    %v1382 = vpack.c.b16 %v1304, %v1303
    %v1383 = vpack.c.b16 %v1306, %v1305
    %v1384 = vpack.c.b16 %v1308, %v1307
    %v1385 = vpack.c.b16 %v1310, %v1309
    %v1386 = vpack.c.b16 %v1312, %v1311
    %v1387 = vpack.c.b16 %v1314, %v1313
    %v1388 = vpack.c.b16 %v1316, %v1315
    %v1389 = vpack.c.b16 %v1318, %v1317
    %v1390 = vpack.c.b16 %v1320, %v1319
    %v1391 = vpack.c.b16 %v1322, %v1321
    %v1392 = vpack.c.b16 %v1324, %v1323
    %v1393 = vpack.c.b16 %v1326, %v1325
    %v1394 = vpack.c.b16 %v1328, %v1327
    %v1395 = vpack.c.b16 %v1330, %v1329
    %v1396 = vpack.c.b16 %v1332, %v1331
    %1461 = vmatprep.subr.bf16.mxu0 0
    %1462 = vmatpush1.bf16.msra.mxu0 %v1333
    %1463 = vmatprep.subr.bf16.mxu0 0
    %1464 = vmatpush1.bf16.msra.mxu0 %v1334
    %1465 = vmatprep.subr.bf16.mxu0 0
    %1466 = vmatpush1.bf16.msra.mxu0 %v1335
    %1467 = vmatprep.subr.bf16.mxu0 0
    %1468 = vmatpush1.bf16.msra.mxu0 %v1336
    %1469 = vmatprep.subr.bf16.mxu0 0
    %1470 = vmatpush1.bf16.msra.mxu0 %v1337
    %1471 = vmatprep.subr.bf16.mxu0 0
    %1472 = vmatpush1.bf16.msra.mxu0 %v1338
    %1473 = vmatprep.subr.bf16.mxu0 0
    %1474 = vmatpush1.bf16.msra.mxu0 %v1339
    %1475 = vmatprep.subr.bf16.mxu0 0
    %1476 = vmatpush1.bf16.msra.mxu0 %v1340
    %1477 = vmatprep.subr.bf16.mxu0 0
    %1478 = vmatpush1.bf16.msra.mxu0 %v1341
    %1479 = vmatprep.subr.bf16.mxu0 0
    %1480 = vmatpush1.bf16.msra.mxu0 %v1342
    %1481 = vmatprep.subr.bf16.mxu0 0
    %1482 = vmatpush1.bf16.msra.mxu0 %v1343
    %1483 = vmatprep.subr.bf16.mxu0 0
    %1484 = vmatpush1.bf16.msra.mxu0 %v1344
    %1485 = vmatprep.subr.bf16.mxu0 0
    %1486 = vmatpush1.bf16.msra.mxu0 %v1345
    %1487 = vmatprep.subr.bf16.mxu0 0
    %1488 = vmatpush1.bf16.msra.mxu0 %v1346
    %1489 = vmatprep.subr.bf16.mxu0 0
    %1490 = vmatpush1.bf16.msra.mxu0 %v1347
    %1491 = vmatprep.subr.bf16.mxu0 0
    %1492 = vmatpush1.bf16.msra.mxu0 %v1348
    %1493 = vmatprep.mubr.bf16.mxu0 %v1057
    %1494 = vmatmul.mubr.bf16.gmra.mrb[0].mxu0 %v1043
    %v1495 = vpop.f32.mrb[0].mxu0
    %v1496 = vadd.f32 0.0, %v1495
    %v1497 = vpop.f32.mrb[0].mxu0
    %v1498 = vpop.f32.mrb[0].mxu0
    %v1499 = vpop.f32.mrb[0].mxu0
    %1500 = vdwg.mxu0
    %1501 = vmatprep.subr.bf16.mxu0 0
    %1502 = vmatpush1.bf16.msra.mxu0 %v1349
    %1503 = vmatprep.subr.bf16.mxu0 0
    %1504 = vmatpush1.bf16.msra.mxu0 %v1350
    %1505 = vmatprep.subr.bf16.mxu0 0
    %1506 = vmatpush1.bf16.msra.mxu0 %v1351
    %1507 = vmatprep.subr.bf16.mxu0 0
    %1508 = vmatpush1.bf16.msra.mxu0 %v1352
    %1509 = vmatprep.subr.bf16.mxu0 0
    %1510 = vmatpush1.bf16.msra.mxu0 %v1353
    %1511 = vmatprep.subr.bf16.mxu0 0
    %1512 = vmatpush1.bf16.msra.mxu0 %v1354
    %1513 = vmatprep.subr.bf16.mxu0 0
    %1514 = vmatpush1.bf16.msra.mxu0 %v1355
    %1515 = vmatprep.subr.bf16.mxu0 0
    %1516 = vmatpush1.bf16.msra.mxu0 %v1356
    %1517 = vmatprep.subr.bf16.mxu0 0
    %1518 = vmatpush1.bf16.msra.mxu0 %v1357
    %1519 = vmatprep.subr.bf16.mxu0 0
    %1520 = vmatpush1.bf16.msra.mxu0 %v1358
    %1521 = vmatprep.subr.bf16.mxu0 0
    %1522 = vmatpush1.bf16.msra.mxu0 %v1359
    %1523 = vmatprep.subr.bf16.mxu0 0
    %1524 = vmatpush1.bf16.msra.mxu0 %v1360
    %1525 = vmatprep.subr.bf16.mxu0 0
    %1526 = vmatpush1.bf16.msra.mxu0 %v1361
    %1527 = vmatprep.subr.bf16.mxu0 0
    %1528 = vmatpush1.bf16.msra.mxu0 %v1362
    %1529 = vmatprep.subr.bf16.mxu0 0
    %1530 = vmatpush1.bf16.msra.mxu0 %v1363
    %1531 = vmatprep.subr.bf16.mxu0 0
    %1532 = vmatpush1.bf16.msra.mxu0 %v1364
    %1533 = vmatprep.mubr.bf16.mxu0 %v1067
    %1534 = vmatmul.mubr.bf16.gmra.mrb[0].mxu0 %v1065
    %v1535 = vpop.f32.mrb[0].mxu0
    %v1536 = vadd.f32 %v1496, %v1535
    %v1537 = vpop.f32.mrb[0].mxu0
    %v1538 = vpop.f32.mrb[0].mxu0
    %v1539 = vpop.f32.mrb[0].mxu0
    %1540 = vdwg.mxu0
    %1541 = vmatprep.subr.bf16.mxu0 0
    %1542 = vmatpush1.bf16.msra.mxu0 %v1365
    %1543 = vmatprep.subr.bf16.mxu0 0
    %1544 = vmatpush1.bf16.msra.mxu0 %v1366
    %1545 = vmatprep.subr.bf16.mxu0 0
    %1546 = vmatpush1.bf16.msra.mxu0 %v1367
    %1547 = vmatprep.subr.bf16.mxu0 0
    %1548 = vmatpush1.bf16.msra.mxu0 %v1368
    %1549 = vmatprep.subr.bf16.mxu0 0
    %1550 = vmatpush1.bf16.msra.mxu0 %v1369
    %1551 = vmatprep.subr.bf16.mxu0 0
    %1552 = vmatpush1.bf16.msra.mxu0 %v1370
    %1553 = vmatprep.subr.bf16.mxu0 0
    %1554 = vmatpush1.bf16.msra.mxu0 %v1371
    %1555 = vmatprep.subr.bf16.mxu0 0
    %1556 = vmatpush1.bf16.msra.mxu0 %v1372
    %1557 = vmatprep.subr.bf16.mxu0 0
    %1558 = vmatpush1.bf16.msra.mxu0 %v1373
    %1559 = vmatprep.subr.bf16.mxu0 0
    %1560 = vmatpush1.bf16.msra.mxu0 %v1374
    %1561 = vmatprep.subr.bf16.mxu0 0
    %1562 = vmatpush1.bf16.msra.mxu0 %v1375
    %1563 = vmatprep.subr.bf16.mxu0 0
    %1564 = vmatpush1.bf16.msra.mxu0 %v1376
    %1565 = vmatprep.subr.bf16.mxu0 0
    %1566 = vmatpush1.bf16.msra.mxu0 %v1377
    %1567 = vmatprep.subr.bf16.mxu0 0
    %1568 = vmatpush1.bf16.msra.mxu0 %v1378
    %1569 = vmatprep.subr.bf16.mxu0 0
    %1570 = vmatpush1.bf16.msra.mxu0 %v1379
    %1571 = vmatprep.subr.bf16.mxu0 0
    %1572 = vmatpush1.bf16.msra.mxu0 %v1380
    %1573 = vmatprep.mubr.bf16.mxu0 %v1064
    %1574 = vmatmul.mubr.bf16.gmra.mrb[0].mxu0 %v1050
    %v1575 = vpop.f32.mrb[0].mxu0
    %v1576 = vadd.f32 %v1536, %v1575
    %v1577 = vpop.f32.mrb[0].mxu0
    %v1578 = vpop.f32.mrb[0].mxu0
    %v1579 = vpop.f32.mrb[0].mxu0
    %1580 = vdwg.mxu0
    %1581 = vmatprep.subr.bf16.mxu0 0
    %1582 = vmatpush1.bf16.msra.mxu0 %v1381
    %1583 = vmatprep.subr.bf16.mxu0 0
    %1584 = vmatpush1.bf16.msra.mxu0 %v1382
    %1585 = vmatprep.subr.bf16.mxu0 0
    %1586 = vmatpush1.bf16.msra.mxu0 %v1383
    %1587 = vmatprep.subr.bf16.mxu0 0
    %1588 = vmatpush1.bf16.msra.mxu0 %v1384
    %1589 = vmatprep.subr.bf16.mxu0 0
    %1590 = vmatpush1.bf16.msra.mxu0 %v1385
    %1591 = vmatprep.subr.bf16.mxu0 0
    %1592 = vmatpush1.bf16.msra.mxu0 %v1386
    %1593 = vmatprep.subr.bf16.mxu0 0
    %1594 = vmatpush1.bf16.msra.mxu0 %v1387
    %1595 = vmatprep.subr.bf16.mxu0 0
    %1596 = vmatpush1.bf16.msra.mxu0 %v1388
    %1597 = vmatprep.subr.bf16.mxu0 0
    %1598 = vmatpush1.bf16.msra.mxu0 %v1389
    %1599 = vmatprep.subr.bf16.mxu0 0
    %1600 = vmatpush1.bf16.msra.mxu0 %v1390
    %1601 = vmatprep.subr.bf16.mxu0 0
    %1602 = vmatpush1.bf16.msra.mxu0 %v1391
    %1603 = vmatprep.subr.bf16.mxu0 0
    %1604 = vmatpush1.bf16.msra.mxu0 %v1392
    %1605 = vmatprep.subr.bf16.mxu0 0
    %1606 = vmatpush1.bf16.msra.mxu0 %v1393
    %1607 = vmatprep.subr.bf16.mxu0 0
    %1608 = vmatpush1.bf16.msra.mxu0 %v1394
    %1609 = vmatprep.subr.bf16.mxu0 0
    %1610 = vmatpush1.bf16.msra.mxu0 %v1395
    %1611 = vmatprep.subr.bf16.mxu0 0
    %1612 = vmatpush1.bf16.msra.mxu0 %v1396
    %1613 = vmatprep.mubr.bf16.mxu0 %v1068
    %1614 = vmatmul.mubr.bf16.gmra.mrb[0].mxu0 %v1066
    %v1615 = vpop.f32.mrb[0].mxu0
    %v1616 = vadd.f32 %v1576, %v1615
    %v1617 = vpop.f32.mrb[0].mxu0
    %v1618 = vpop.f32.mrb[0].mxu0
    %v1619 = vpop.f32.mrb[0].mxu0
    %1620 = vdwg.mxu0
    %v1621 = vadd.f32 %v864, %v1616
    %1622 = vst [vmem:[#allocation3] sm:$0xff] %v1621
    // Predicated region
    $region58: #{tpu_custom_call.1} parent=1 // pred_check
      %p1623 = pneg %p99
    $region59: #{tpu_custom_call.1} parent=1 // pred_check_branch
      %1625 = sbr.rel (%p1623) target = $region61
    $region60: #{tpu_custom_call.1} parent=1 // pred_region
      %v1626 = vld [vmem:[#allocation2] sm:$0xff]
      %v1627 = vld [vmem:[%s3] sm:$0x1]
      %v1629 = vlaneseq
      %v1630 = vshrl.u32 %v1629, 7
      %v1631 = vsub.s32 0, %v1630
      %v1632 = vrot.slane %v1627, %v1631
      %v1634 = vadd.f32 %v1626, %v1632
      %v1635 = vmax.f32 %v1634, 0.0
      %v1636 = vld [vmem:[#allocation3] sm:$0xff]
      %v1637 = vld [vmem:[%s5] sm:$0x1]
      %v1639 = vlaneseq
      %v1640 = vshrl.u32 %v1639, 7
      %v1641 = vsub.s32 0, %v1640
      %v1642 = vrot.slane %v1637, %v1641
      %v1644 = vadd.f32 %v1636, %v1642
      %v1645 = vmax.f32 %v1644, 0.0
      %v1646 = vpack.c.bf16 %v1635, %v1635
      %v1647 = vpack.c.bf16 %v1645, %v1645
      %v1648 = vld [vmem:[#allocation12] sm:$0xf]
      %v1649 = vld [vmem:[#allocation12 + $0x4] sm:$0xf]
      %v1650 = vld [vmem:[#allocation12 + $0x8] sm:$0xf]
      %v1651 = vld [vmem:[#allocation12 + $0xc] sm:$0xf]
      %v1652 = vld [vmem:[#allocation12 + $0x10] sm:$0xf]
      %v1653 = vld [vmem:[#allocation12 + $0x14] sm:$0xf]
      %v1654 = vld [vmem:[#allocation12 + $0x18] sm:$0xf]
      %v1655 = vld [vmem:[#allocation12 + $0x1c] sm:$0xf]
      %v1656 = vld [vmem:[#allocation12 + $0x20] sm:$0xf]
      %v1657 = vld [vmem:[#allocation12 + $0x24] sm:$0xf]
      %v1658 = vld [vmem:[#allocation12 + $0x28] sm:$0xf]
      %v1659 = vld [vmem:[#allocation12 + $0x2c] sm:$0xf]
      %v1660 = vld [vmem:[#allocation12 + $0x30] sm:$0xf]
      %v1661 = vld [vmem:[#allocation12 + $0x34] sm:$0xf]
      %v1662 = vld [vmem:[#allocation12 + $0x38] sm:$0xf]
      %v1663 = vld [vmem:[#allocation12 + $0x3c] sm:$0xf]
      %v1664 = vld [vmem:[#allocation12 + $0x40] sm:$0xf]
      %v1665 = vld [vmem:[#allocation12 + $0x44] sm:$0xf]
      %v1666 = vld [vmem:[#allocation12 + $0x48] sm:$0xf]
      %v1667 = vld [vmem:[#allocation12 + $0x4c] sm:$0xf]
      %v1668 = vld [vmem:[#allocation12 + $0x50] sm:$0xf]
      %v1669 = vld [vmem:[#allocation12 + $0x54] sm:$0xf]
      %v1670 = vld [vmem:[#allocation12 + $0x58] sm:$0xf]
      %v1671 = vld [vmem:[#allocation12 + $0x5c] sm:$0xf]
      %v1672 = vld [vmem:[#allocation12 + $0x60] sm:$0xf]
      %v1673 = vld [vmem:[#allocation12 + $0x64] sm:$0xf]
      %v1674 = vld [vmem:[#allocation12 + $0x68] sm:$0xf]
      %v1675 = vld [vmem:[#allocation12 + $0x6c] sm:$0xf]
      %v1676 = vld [vmem:[#allocation12 + $0x70] sm:$0xf]
      %v1677 = vld [vmem:[#allocation12 + $0x74] sm:$0xf]
      %v1678 = vld [vmem:[#allocation12 + $0x78] sm:$0xf]
      %v1679 = vld [vmem:[#allocation12 + $0x7c] sm:$0xf]
      %v1680 = vld [vmem:[%s7] sm:$0x1]
      %v1682 = vlaneseq
      %v1683 = vshrl.u32 %v1682, 7
      %v1684 = vsub.s32 0, %v1683
      %v1685 = vrot.slane %v1680, %v1684
      %v1719 = vunpack.c.l.b16 %v1648
      %v1720 = vunpack.c.l.b16 %v1649
      %v1721 = vunpack.c.l.b16 %v1650
      %v1722 = vunpack.c.l.b16 %v1651
      %v1723 = vunpack.c.l.b16 %v1652
      %v1724 = vunpack.c.l.b16 %v1653
      %v1725 = vunpack.c.l.b16 %v1654
      %v1726 = vunpack.c.l.b16 %v1655
      %v1727 = vunpack.c.l.b16 %v1656
      %v1728 = vunpack.c.l.b16 %v1657
      %v1729 = vunpack.c.l.b16 %v1658
      %v1730 = vunpack.c.l.b16 %v1659
      %v1731 = vunpack.c.l.b16 %v1660
      %v1732 = vunpack.c.l.b16 %v1661
      %v1733 = vunpack.c.l.b16 %v1662
      %v1734 = vunpack.c.l.b16 %v1663
      %v1735 = vunpack.c.l.b16 %v1664
      %v1736 = vunpack.c.l.b16 %v1665
      %v1737 = vunpack.c.l.b16 %v1666
      %v1738 = vunpack.c.l.b16 %v1667
      %v1739 = vunpack.c.l.b16 %v1668
      %v1740 = vunpack.c.l.b16 %v1669
      %v1741 = vunpack.c.l.b16 %v1670
      %v1742 = vunpack.c.l.b16 %v1671
      %v1743 = vunpack.c.l.b16 %v1672
      %v1744 = vunpack.c.l.b16 %v1673
      %v1745 = vunpack.c.l.b16 %v1674
      %v1746 = vunpack.c.l.b16 %v1675
      %v1747 = vunpack.c.l.b16 %v1676
      %v1748 = vunpack.c.l.b16 %v1677
      %v1749 = vunpack.c.l.b16 %v1678
      %v1750 = vunpack.c.l.b16 %v1679
      %v1751 = vpack.c.b16 %v1720, %v1719
      %v1752 = vpack.c.b16 %v1722, %v1721
      %v1753 = vpack.c.b16 %v1724, %v1723
      %v1754 = vpack.c.b16 %v1726, %v1725
      %v1755 = vpack.c.b16 %v1728, %v1727
      %v1756 = vpack.c.b16 %v1730, %v1729
      %v1757 = vpack.c.b16 %v1732, %v1731
      %v1758 = vpack.c.b16 %v1734, %v1733
      %v1759 = vpack.c.b16 %v1736, %v1735
      %v1760 = vpack.c.b16 %v1738, %v1737
      %v1761 = vpack.c.b16 %v1740, %v1739
      %v1762 = vpack.c.b16 %v1742, %v1741
      %v1763 = vpack.c.b16 %v1744, %v1743
      %v1764 = vpack.c.b16 %v1746, %v1745
      %v1765 = vpack.c.b16 %v1748, %v1747
      %v1766 = vpack.c.b16 %v1750, %v1749
      %1783 = vmatprep.subr.bf16.mxu0 0
      %1784 = vmatpush1.bf16.msra.mxu0 %v1751
      %1785 = vmatprep.subr.bf16.mxu0 0
      %1786 = vmatpush1.bf16.msra.mxu0 %v1752
      %1787 = vmatprep.subr.bf16.mxu0 0
      %1788 = vmatpush1.bf16.msra.mxu0 %v1753
      %1789 = vmatprep.subr.bf16.mxu0 0
      %1790 = vmatpush1.bf16.msra.mxu0 %v1754
      %1791 = vmatprep.subr.bf16.mxu0 0
      %1792 = vmatpush1.bf16.msra.mxu0 %v1755
      %1793 = vmatprep.subr.bf16.mxu0 0
      %1794 = vmatpush1.bf16.msra.mxu0 %v1756
      %1795 = vmatprep.subr.bf16.mxu0 0
      %1796 = vmatpush1.bf16.msra.mxu0 %v1757
      %1797 = vmatprep.subr.bf16.mxu0 0
      %1798 = vmatpush1.bf16.msra.mxu0 %v1758
      %1799 = vmatprep.subr.bf16.mxu0 0
      %1800 = vmatpush1.bf16.msra.mxu0 %v1759
      %1801 = vmatprep.subr.bf16.mxu0 0
      %1802 = vmatpush1.bf16.msra.mxu0 %v1760
      %1803 = vmatprep.subr.bf16.mxu0 0
      %1804 = vmatpush1.bf16.msra.mxu0 %v1761
      %1805 = vmatprep.subr.bf16.mxu0 0
      %1806 = vmatpush1.bf16.msra.mxu0 %v1762
      %1807 = vmatprep.subr.bf16.mxu0 0
      %1808 = vmatpush1.bf16.msra.mxu0 %v1763
      %1809 = vmatprep.subr.bf16.mxu0 0
      %1810 = vmatpush1.bf16.msra.mxu0 %v1764
      %1811 = vmatprep.subr.bf16.mxu0 0
      %1812 = vmatpush1.bf16.msra.mxu0 %v1765
      %1813 = vmatprep.subr.bf16.mxu0 0
      %1814 = vmatpush1.bf16.msra.mxu0 %v1766
      %1815 = vmatprep.mubr.bf16.mxu0 %v1647
      %1816 = vmatmul.mubr.bf16.gmra.mrb[0].mxu0 %v1646
      %v1817 = vpop.f32.mrb[0].mxu0
      %v1818 = vadd.f32 %v1685, %v1817
      %v1819 = vpop.f32.mrb[0].mxu0
      %v1820 = vpop.f32.mrb[0].mxu0
      %v1821 = vpop.f32.mrb[0].mxu0
      %1822 = vdwg.mxu0
      %1823 = vst [vmem:[#allocation13] sm:$0xff] %v1818
    $region61: #{tpu_custom_call.1} parent=1 // pred_fallthru
      _
    // Predicated region
    $region62: #{tpu_custom_call.1} parent=1 // pred_check
      _
    $region63: #{tpu_custom_call.1} parent=1 // pred_check_branch
      %1825 = sbr.rel (0) target = $region65
    $region64: #{tpu_custom_call.1} parent=1 // pred_region
      %s1827 = ssub.s32 128, 32
      %1828 = vsyncadd [#allocation6], %s1827
      %s1829 = sshll.u32 [#allocation13], 4
      %s1830 = int_to_ptr.vmem [resolvable:$true] %s1829
      %1835 = dma.vmem_to_hbm [thread:$0]  %s1830, 32, %s8, [#allocation6], 32, 32, 2
    $region65: #{tpu_custom_call.1} parent=1 // pred_fallthru
      _
    // Predicated region
    $region66: #{tpu_custom_call.1} parent=1 // pred_check
      _
    $region67: #{tpu_custom_call.1} parent=1 // pred_check_branch
      %1837 = sbr.rel (0) target = $region69
    $region68: #{tpu_custom_call.1} parent=1 // pred_region
      %1838 = dma.done [#allocation6], 128
    $region69: #{tpu_custom_call.1} parent=1 // pred_fallthru
      _
    %1839 = vsyncpa [#allocation5], 1
    %1840 = vsyncpa [#allocation8], 1
    %1841 = vsyncpa [#allocation11], 1
    %1842 = vsyncpa [#allocation6], 1

</llo_original>
